<compile_context>
chip_gen: v7x
topology: tpu7x:2x2x1
jax: 0.10.0
libtpu: 0.0.40
codegen_flags: <defaults>
</compile_context>

<pallas_src>
import jax
import jax.numpy as jnp
from jax import lax
from jax.experimental import pallas as pl
from jax.experimental.pallas import tpu as pltpu

_LANE = 128


def _full_spec(shape):
    return pl.BlockSpec(shape, lambda i: (0,) * len(shape))


# ------------------------- fused forward-pass kernel -------------------------

def fused_gat_kernel(x_ref, ehw_ref, ehb_ref,
                     g1_ws_ref, g1_wz_ref, g1_was_ref, g1_wad_ref,
                     g2_ws_ref, g2_wz_ref, g2_was_ref, g2_wad_ref,
                     lin_w_ref, lin_b_ref, adj_ref,
                     y_ref, att1_ref, att2_ref):
    f32 = jnp.float32
    dn = (((1,), (1,)), ((), ()))          # contract last dims -> x @ W^T

    # --- embedding_h ---
    h = lax.dot_general(x_ref[...], ehw_ref[...], dn,
                        preferred_element_type=f32) + ehb_ref[...]   # [N, H]

    # --- adjacency mask, built once and reused by both layers ---
    mask_b = adj_ref[...] > 0                       # bool [N, N], adj[dst, src]
    mask_f = mask_b.astype(f32)
    neg = jnp.float32(-1e30)
    tiny = jnp.float32(1e-30)

    def gat_layer(h, ws, wz, wa_src, wa_dst):
        h_s = lax.dot_general(h, ws, dn, preferred_element_type=f32)   # [N, H]
        z = lax.dot_general(h, wz, dn, preferred_element_type=f32)     # [N, H]

        # attention logits: e[dst, src] = leaky_relu(wa_src.z_src + wa_dst.z_dst)
        # s_dst: VPU multiply + lane reduce -> sublane-oriented column [N, 1]
        s_dst = jnp.sum(z * wa_dst, axis=1, keepdims=True)             # [N, 1]
        # s_src must be lane-oriented; the [1,H] x [N,H]^T dot yields [1, N] directly.
        s_src = lax.dot_general(wa_src, z, dn, preferred_element_type=f32)  # [1, N]
        e_raw = s_dst + s_src                                          # [N, N]
        e = jnp.where(e_raw > 0, e_raw, 0.01 * e_raw)                  # leaky_relu(0.01)

        e_m = jnp.where(mask_b, e, neg)

        # per-destination softmax over incoming edges (DGL reduce_func, dim=1)
        row_max = jnp.max(e_m, axis=1, keepdims=True)                  # [N, 1]
        p = jnp.exp(e_m - row_max) * mask_f                            # [N, N]
        denom = jnp.maximum(jnp.sum(p, axis=1, keepdims=True), tiny)   # [N, 1]
        a_loc = p / denom

        agg = lax.dot_general(a_loc, z, (((1,), (0,)), ((), ())),
                              preferred_element_type=f32)              # [N, H]
        h_out = h + jnp.maximum(h_s + agg, 0.0)                        # h_in + relu(.)

        # global softmax over all edges (edge_attention's 'a' = softmax(src_e, dim=0)).
        # Reuse p:  exp(e_m - g_max) * mask == p * exp(row_max - g_max).
        g_max = jnp.max(row_max, axis=0, keepdims=True)                # [1, 1]
        pg = p * jnp.exp(row_max - g_max)                              # [N, N]
        g_sum = jnp.maximum(
            jnp.sum(jnp.sum(pg, axis=1, keepdims=True), axis=0, keepdims=True), tiny)
        att = pg / g_sum
        return h_out, att

    h, att1 = gat_layer(h, g1_ws_ref[...], g1_wz_ref[...],
                        g1_was_ref[...], g1_wad_ref[...])
    att1_ref[...] = att1
    h, att2 = gat_layer(h, g2_ws_ref[...], g2_wz_ref[...],
                        g2_was_ref[...], g2_wad_ref[...])
    att2_ref[...] = att2

    # --- linear1 (dropout_l is identity in eval mode); weight padded to 128 lanes
    #     outside the kernel so this store is a full, unmasked [N, 128] write.
    y_ref[...] = lax.dot_general(h, lin_w_ref[...], dn,
                                 preferred_element_type=f32) + lin_b_ref[...]


# ----------------------------- model wrapper --------------------------------

def my_gat_vis_forward(params, adj, feats, e_w=None):
    n = feats.shape[0]
    x = feats.reshape(n, -1).astype(jnp.float32)          # feats.view(N, -1)
    hidden = params["emb_h_w"].shape[0]
    out_dim = params["lin1_w"].shape[0]

    # embedding_e only feeds g.edata['w'], which is unused when att_ew=False -> dropped.

    ehb2 = params["emb_h_b"].reshape(1, hidden)
    g1_wa_src = params["g1_wa"][:, :hidden]
    g1_wa_dst = params["g1_wa"][:, hidden:2 * hidden]
    g2_wa_src = params["g2_wa"][:, :hidden]
    g2_wa_dst = params["g2_wa"][:, hidden:2 * hidden]

    # lane-dense output: zero-pad linear1 to 128 output lanes, slice afterwards.
    pad_out = max(_LANE, ((out_dim + _LANE - 1) // _LANE) * _LANE)
    lin_w_pad = jnp.zeros((pad_out, hidden), jnp.float32).at[:out_dim].set(params["lin1_w"])
    lin_b_pad = jnp.zeros((1, pad_out), jnp.float32).at[0, :out_dim].set(params["lin1_b"])

    inputs = (x, params["emb_h_w"], ehb2,
              params["g1_ws"], params["g1_wz"], g1_wa_src, g1_wa_dst,
              params["g2_ws"], params["g2_wz"], g2_wa_src, g2_wa_dst,
              lin_w_pad, lin_b_pad, adj)

    out_shape = (
        jax.ShapeDtypeStruct((n, pad_out), jnp.float32),   # y (padded lanes)
        jax.ShapeDtypeStruct((n, n), jnp.float32),         # att1
        jax.ShapeDtypeStruct((n, n), jnp.float32),         # att2
    )

    y_pad, att1, att2 = pl.pallas_call(
        fused_gat_kernel,
        grid=(1,),
        in_specs=[_full_spec(a.shape) for a in inputs],
        out_specs=(_full_spec((n, pad_out)), _full_spec((n, n)), _full_spec((n, n))),
        out_shape=out_shape,
        compiler_params=pltpu.CompilerParams(dimension_semantics=("arbitrary",)),
    )(*inputs)

    return y_pad[:, :out_dim], att1, att2


# ----------------------------- pure-JAX reference ---------------------------

def _ref_gat_layer(h, ws, wz, wa, adj):
    hd = h.shape[1]
    h_s = h @ ws.T
    z = h @ wz.T
    s_src = z @ wa[:, :hd].T        # [N,1]
    s_dst = z @ wa[:, hd:].T        # [N,1]
    e_raw = s_dst + s_src.T         # [N,N]  e[dst,src]
    e = jnp.where(e_raw > 0, e_raw, 0.01 * e_raw)
    mask = (adj > 0).astype(jnp.float32)
    e_m = jnp.where(mask > 0, e, -1e30)
    p = jnp.exp(e_m - jnp.max(e_m, axis=1, keepdims=True)) * mask
    a_loc = p / jnp.sum(p, axis=1, keepdims=True)
    h_out = h + jnp.maximum(h_s + a_loc @ z, 0.0)
    pg = jnp.exp(e_m - jnp.max(e_m)) * mask
    att = pg / jnp.sum(pg)
    return h_out, att


def _ref_forward(params, adj, feats, e_w):
    n = feats.shape[0]
    x = feats.reshape(n, -1)
    h = x @ params["emb_h_w"].T + params["emb_h_b"]
    h, att1 = _ref_gat_layer(h, params["g1_ws"], params["g1_wz"], params["g1_wa"], adj)
    h, att2 = _ref_gat_layer(h, params["g2_ws"], params["g2_wz"], params["g2_wa"], adj)
    y = h @ params["lin1_w"].T + params["lin1_b"]
    return y, att1, att2


# ----------------------------------- main -----------------------------------

if __name__ == "__main__":
    key = jax.random.PRNGKey(0)
    N, C, S = 8, 4, 4          # 8 nodes, per-node feature map flattened to 16
    input_dim = C * S
    hidden = 32
    out_dim = 2

    # adjacency: self-loops + directed ring; adj[dst, src] = 1
    idx = jnp.arange(N)
    adj = jnp.zeros((N, N), jnp.float32)
    adj = adj.at[idx, idx].set(1.0)
    adj = adj.at[(idx + 1) % N, idx].set(1.0)
    E = int(jnp.sum(adj))      # 16 edges

    keys = jax.random.split(key, 12)

    def xavier(k, shape, gain):
        fan_out, fan_in = shape
        std = gain * (2.0 / (fan_in + fan_out)) ** 0.5
        return std * jax.random.normal(k, shape, jnp.float32)

    g_relu = 2.0 ** 0.5
    params = dict(
        emb_h_w=xavier(keys[0], (hidden, input_dim), 1.0),
        emb_h_b=jnp.zeros((hidden,), jnp.float32),
        emb_e_w=xavier(keys[1], (hidden, 1), 1.0),     # unused (att_ew=False)
        emb_e_b=jnp.zeros((hidden,), jnp.float32),
        g1_ws=xavier(keys[2], (hidden, hidden), g_relu),
        g1_wz=xavier(keys[3], (hidden, hidden), g_relu),
        g1_wa=xavier(keys[4], (1, 2 * hidden), g_relu),
        g2_ws=xavier(keys[5], (hidden, hidden), g_relu),
        g2_wz=xavier(keys[6], (hidden, hidden), g_relu),
        g2_wa=xavier(keys[7], (1, 2 * hidden), g_relu),
        lin1_w=xavier(keys[8], (out_dim, hidden), g_relu),
        lin1_b=jnp.zeros((out_dim,), jnp.float32),
    )

    feats = jax.random.normal(keys[9], (N, C, S), jnp.float32)
    e_w = jax.random.normal(keys[10], (E, 1), jnp.float32)   # unused (att_ew=False)

    y, att1, att2 = my_gat_vis_forward(params, adj, feats, e_w)
    jax.block_until_ready((y, att1, att2))

    y_ref, att1_ref, att2_ref = _ref_forward(params, adj, feats, e_w)
    assert jnp.allclose(y, y_ref, rtol=1e-4, atol=1e-4), "output mismatch"
    assert jnp.allclose(att1, att1_ref, rtol=1e-4, atol=1e-5), "att1 mismatch"
    assert jnp.allclose(att2, att2_ref, rtol=1e-4, atol=1e-5), "att2 mismatch"

    print("KERNEL_OK")
</pallas_src>

<mosaic_0001>
module attributes {stable_mosaic.version = 11 : i64} {
  func.func @fused_gat_kernel(%arg0: i32, %arg1: memref<8x16xf32, #tpu.memory_space<vmem>>, %arg2: memref<32x16xf32, #tpu.memory_space<vmem>>, %arg3: memref<1x32xf32, #tpu.memory_space<vmem>>, %arg4: memref<32x32xf32, #tpu.memory_space<vmem>>, %arg5: memref<32x32xf32, #tpu.memory_space<vmem>>, %arg6: memref<1x32xf32, #tpu.memory_space<vmem>>, %arg7: memref<1x32xf32, #tpu.memory_space<vmem>>, %arg8: memref<32x32xf32, #tpu.memory_space<vmem>>, %arg9: memref<32x32xf32, #tpu.memory_space<vmem>>, %arg10: memref<1x32xf32, #tpu.memory_space<vmem>>, %arg11: memref<1x32xf32, #tpu.memory_space<vmem>>, %arg12: memref<128x32xf32, #tpu.memory_space<vmem>>, %arg13: memref<1x128xf32, #tpu.memory_space<vmem>>, %arg14: memref<8x8xf32, #tpu.memory_space<vmem>>, %arg15: memref<8x128xf32, #tpu.memory_space<vmem>>, %arg16: memref<8x8xf32, #tpu.memory_space<vmem>>, %arg17: memref<8x8xf32, #tpu.memory_space<vmem>>) attributes {dimension_semantics = [#tpu.dimension_semantics<arbitrary>], iteration_bounds = array<i64: 1>, scalar_prefetch = 0 : i64, scratch_operands = 0 : i64, tpu.core_type = #tpu.core_type<tc>, window_params = [{pipeline_mode = #tpu.pipeline_mode<synchronous>, transform_indices = @transform_0, window_bounds = array<i64: 8, 16>}, {pipeline_mode = #tpu.pipeline_mode<synchronous>, transform_indices = @transform_1, window_bounds = array<i64: 32, 16>}, {pipeline_mode = #tpu.pipeline_mode<synchronous>, transform_indices = @transform_2, window_bounds = array<i64: 1, 32>}, {pipeline_mode = #tpu.pipeline_mode<synchronous>, transform_indices = @transform_3, window_bounds = array<i64: 32, 32>}, {pipeline_mode = #tpu.pipeline_mode<synchronous>, transform_indices = @transform_4, window_bounds = array<i64: 32, 32>}, {pipeline_mode = #tpu.pipeline_mode<synchronous>, transform_indices = @transform_5, window_bounds = array<i64: 1, 32>}, {pipeline_mode = #tpu.pipeline_mode<synchronous>, transform_indices = @transform_6, window_bounds = array<i64: 1, 32>}, {pipeline_mode = #tpu.pipeline_mode<synchronous>, transform_indices = @transform_7, window_bounds = array<i64: 32, 32>}, {pipeline_mode = #tpu.pipeline_mode<synchronous>, transform_indices = @transform_8, window_bounds = array<i64: 32, 32>}, {pipeline_mode = #tpu.pipeline_mode<synchronous>, transform_indices = @transform_9, window_bounds = array<i64: 1, 32>}, {pipeline_mode = #tpu.pipeline_mode<synchronous>, transform_indices = @transform_10, window_bounds = array<i64: 1, 32>}, {pipeline_mode = #tpu.pipeline_mode<synchronous>, transform_indices = @transform_11, window_bounds = array<i64: 128, 32>}, {pipeline_mode = #tpu.pipeline_mode<synchronous>, transform_indices = @transform_12, window_bounds = array<i64: 1, 128>}, {pipeline_mode = #tpu.pipeline_mode<synchronous>, transform_indices = @transform_13, window_bounds = array<i64: 8, 8>}, {pipeline_mode = #tpu.pipeline_mode<synchronous>, transform_indices = @transform_14, window_bounds = array<i64: 8, 128>}, {pipeline_mode = #tpu.pipeline_mode<synchronous>, transform_indices = @transform_15, window_bounds = array<i64: 8, 8>}, {pipeline_mode = #tpu.pipeline_mode<synchronous>, transform_indices = @transform_16, window_bounds = array<i64: 8, 8>}]} {
    %c0 = arith.constant 0 : index
    %c0_0 = arith.constant 0 : index
    %0 = vector.load %arg1[%c0, %c0_0] : memref<8x16xf32, #tpu.memory_space<vmem>>, vector<8x16xf32>
    %c0_1 = arith.constant 0 : index
    %c0_2 = arith.constant 0 : index
    %1 = vector.load %arg2[%c0_1, %c0_2] : memref<32x16xf32, #tpu.memory_space<vmem>>, vector<32x16xf32>
    %cst = arith.constant dense<0.000000e+00> : vector<8x32xf32>
    %2 = tpu.matmul %0, %1, %cst {dimension_numbers = #tpu.dot_dimension_numbers<[1], [1], [0], [0], [0, 0, 1, 0], [], []>} : vector<8x16xf32>, vector<32x16xf32>, vector<8x32xf32> -> vector<8x32xf32>
    %c0_3 = arith.constant 0 : index
    %c0_4 = arith.constant 0 : index
    %3 = vector.load %arg3[%c0_3, %c0_4] : memref<1x32xf32, #tpu.memory_space<vmem>>, vector<1x32xf32>
    %4 = vector.broadcast %3 : vector<1x32xf32> to vector<8x32xf32>
    %5 = arith.addf %2, %4 : vector<8x32xf32>
    %c0_5 = arith.constant 0 : index
    %c0_6 = arith.constant 0 : index
    %6 = vector.load %arg14[%c0_5, %c0_6] : memref<8x8xf32, #tpu.memory_space<vmem>>, vector<8x8xf32>
    %cst_7 = arith.constant 0.000000e+00 : f32
    %7 = vector.broadcast %cst_7 : f32 to vector<8x8xf32>
    %8 = arith.cmpf ogt, %6, %7 : vector<8x8xf32>
    %9 = arith.extui %8 : vector<8x8xi1> to vector<8x8xi32>
    %10 = arith.sitofp %9 : vector<8x8xi32> to vector<8x8xf32>
    %c0_8 = arith.constant 0 : index
    %c0_9 = arith.constant 0 : index
    %11 = vector.load %arg4[%c0_8, %c0_9] : memref<32x32xf32, #tpu.memory_space<vmem>>, vector<32x32xf32>
    %c0_10 = arith.constant 0 : index
    %c0_11 = arith.constant 0 : index
    %12 = vector.load %arg5[%c0_10, %c0_11] : memref<32x32xf32, #tpu.memory_space<vmem>>, vector<32x32xf32>
    %c0_12 = arith.constant 0 : index
    %c0_13 = arith.constant 0 : index
    %13 = vector.load %arg6[%c0_12, %c0_13] : memref<1x32xf32, #tpu.memory_space<vmem>>, vector<1x32xf32>
    %c0_14 = arith.constant 0 : index
    %c0_15 = arith.constant 0 : index
    %14 = vector.load %arg7[%c0_14, %c0_15] : memref<1x32xf32, #tpu.memory_space<vmem>>, vector<1x32xf32>
    %cst_16 = arith.constant dense<0.000000e+00> : vector<8x32xf32>
    %15 = tpu.matmul %5, %11, %cst_16 {dimension_numbers = #tpu.dot_dimension_numbers<[1], [1], [0], [0], [0, 0, 1, 0], [], []>} : vector<8x32xf32>, vector<32x32xf32>, vector<8x32xf32> -> vector<8x32xf32>
    %cst_17 = arith.constant dense<0.000000e+00> : vector<8x32xf32>
    %16 = tpu.matmul %5, %12, %cst_17 {dimension_numbers = #tpu.dot_dimension_numbers<[1], [1], [0], [0], [0, 0, 1, 0], [], []>} : vector<8x32xf32>, vector<32x32xf32>, vector<8x32xf32> -> vector<8x32xf32>
    %17 = vector.broadcast %14 : vector<1x32xf32> to vector<8x32xf32>
    %18 = arith.mulf %16, %17 : vector<8x32xf32>
    %cst_18 = arith.constant dense<0.000000e+00> : vector<8xf32>
    %19 = vector.multi_reduction <add>, %18, %cst_18 [1] : vector<8x32xf32> to vector<8xf32>
    %20 = vector.shape_cast %19 : vector<8xf32> to vector<8x1xf32>
    %cst_19 = arith.constant dense<0.000000e+00> : vector<1x8xf32>
    %21 = tpu.matmul %13, %16, %cst_19 {dimension_numbers = #tpu.dot_dimension_numbers<[1], [1], [0], [0], [0, 0, 1, 0], [], []>} : vector<1x32xf32>, vector<8x32xf32>, vector<1x8xf32> -> vector<1x8xf32>
    %22 = vector.broadcast %20 : vector<8x1xf32> to vector<8x8xf32>
    %23 = vector.broadcast %21 : vector<1x8xf32> to vector<8x8xf32>
    %24 = arith.addf %22, %23 : vector<8x8xf32>
    %cst_20 = arith.constant 0.000000e+00 : f32
    %25 = vector.broadcast %cst_20 : f32 to vector<8x8xf32>
    %26 = arith.cmpf ogt, %24, %25 : vector<8x8xf32>
    %cst_21 = arith.constant 0.00999999977 : f32
    %27 = vector.broadcast %cst_21 : f32 to vector<8x8xf32>
    %28 = arith.mulf %27, %24 : vector<8x8xf32>
    %29 = arith.select %26, %24, %28 : vector<8x8xi1>, vector<8x8xf32>
    %cst_22 = arith.constant -1.000000e+30 : f32
    %30 = vector.broadcast %cst_22 : f32 to vector<8x8xf32>
    %31 = arith.select %8, %29, %30 : vector<8x8xi1>, vector<8x8xf32>
    %cst_23 = arith.constant dense<0xFF800000> : vector<8xf32>
    %32 = vector.multi_reduction <maximumf>, %31, %cst_23 [1] : vector<8x8xf32> to vector<8xf32>
    %33 = vector.shape_cast %32 : vector<8xf32> to vector<8x1xf32>
    %34 = vector.broadcast %33 : vector<8x1xf32> to vector<8x8xf32>
    %35 = arith.subf %31, %34 : vector<8x8xf32>
    %36 = math.exp %35 : vector<8x8xf32>
    %37 = arith.mulf %36, %10 : vector<8x8xf32>
    %cst_24 = arith.constant dense<0.000000e+00> : vector<8xf32>
    %38 = vector.multi_reduction <add>, %37, %cst_24 [1] : vector<8x8xf32> to vector<8xf32>
    %39 = vector.shape_cast %38 : vector<8xf32> to vector<8x1xf32>
    %cst_25 = arith.constant 1.000000e-30 : f32
    %40 = vector.broadcast %cst_25 : f32 to vector<8x1xf32>
    %41 = arith.maximumf %39, %40 : vector<8x1xf32>
    %42 = vector.broadcast %41 : vector<8x1xf32> to vector<8x8xf32>
    %43 = arith.divf %37, %42 : vector<8x8xf32>
    %cst_26 = arith.constant dense<0.000000e+00> : vector<8x32xf32>
    %44 = tpu.matmul %43, %16, %cst_26 {dimension_numbers = #tpu.dot_dimension_numbers<[1], [0], [0], [1], [0, 0, 1, 1], [], []>} : vector<8x8xf32>, vector<8x32xf32>, vector<8x32xf32> -> vector<8x32xf32>
    %45 = arith.addf %15, %44 : vector<8x32xf32>
    %cst_27 = arith.constant 0.000000e+00 : f32
    %46 = vector.broadcast %cst_27 : f32 to vector<8x32xf32>
    %47 = arith.maximumf %45, %46 : vector<8x32xf32>
    %48 = arith.addf %5, %47 : vector<8x32xf32>
    %cst_28 = arith.constant dense<0xFF800000> : vector<1xf32>
    %49 = vector.multi_reduction <maximumf>, %33, %cst_28 [0] : vector<8x1xf32> to vector<1xf32>
    %50 = vector.shape_cast %49 : vector<1xf32> to vector<1x1xf32>
    %51 = vector.broadcast %50 : vector<1x1xf32> to vector<8x1xf32>
    %52 = arith.subf %33, %51 : vector<8x1xf32>
    %53 = math.exp %52 : vector<8x1xf32>
    %54 = vector.broadcast %53 : vector<8x1xf32> to vector<8x8xf32>
    %55 = arith.mulf %37, %54 : vector<8x8xf32>
    %cst_29 = arith.constant dense<0.000000e+00> : vector<8xf32>
    %56 = vector.multi_reduction <add>, %55, %cst_29 [1] : vector<8x8xf32> to vector<8xf32>
    %57 = vector.shape_cast %56 : vector<8xf32> to vector<8x1xf32>
    %cst_30 = arith.constant dense<0.000000e+00> : vector<1xf32>
    %58 = vector.multi_reduction <add>, %57, %cst_30 [0] : vector<8x1xf32> to vector<1xf32>
    %59 = vector.shape_cast %58 : vector<1xf32> to vector<1x1xf32>
    %cst_31 = arith.constant 1.000000e-30 : f32
    %60 = vector.broadcast %cst_31 : f32 to vector<1x1xf32>
    %61 = arith.maximumf %59, %60 : vector<1x1xf32>
    %62 = vector.broadcast %61 : vector<1x1xf32> to vector<8x8xf32>
    %63 = arith.divf %55, %62 : vector<8x8xf32>
    %c0_32 = arith.constant 0 : index
    %c0_33 = arith.constant 0 : index
    %64 = vector.load %arg16[%c0_32, %c0_33] : memref<8x8xf32, #tpu.memory_space<vmem>>, vector<8x8xf32>
    tpu.vector_store %arg16[%c0_32, %c0_33], %63 {strides = array<i32>} : memref<8x8xf32, #tpu.memory_space<vmem>>, vector<8x8xf32>,
    %c0_34 = arith.constant 0 : index
    %c0_35 = arith.constant 0 : index
    %65 = vector.load %arg8[%c0_34, %c0_35] : memref<32x32xf32, #tpu.memory_space<vmem>>, vector<32x32xf32>
    %c0_36 = arith.constant 0 : index
    %c0_37 = arith.constant 0 : index
    %66 = vector.load %arg9[%c0_36, %c0_37] : memref<32x32xf32, #tpu.memory_space<vmem>>, vector<32x32xf32>
    %c0_38 = arith.constant 0 : index
    %c0_39 = arith.constant 0 : index
    %67 = vector.load %arg10[%c0_38, %c0_39] : memref<1x32xf32, #tpu.memory_space<vmem>>, vector<1x32xf32>
    %c0_40 = arith.constant 0 : index
    %c0_41 = arith.constant 0 : index
    %68 = vector.load %arg11[%c0_40, %c0_41] : memref<1x32xf32, #tpu.memory_space<vmem>>, vector<1x32xf32>
    %cst_42 = arith.constant dense<0.000000e+00> : vector<8x32xf32>
    %69 = tpu.matmul %48, %65, %cst_42 {dimension_numbers = #tpu.dot_dimension_numbers<[1], [1], [0], [0], [0, 0, 1, 0], [], []>} : vector<8x32xf32>, vector<32x32xf32>, vector<8x32xf32> -> vector<8x32xf32>
    %cst_43 = arith.constant dense<0.000000e+00> : vector<8x32xf32>
    %70 = tpu.matmul %48, %66, %cst_43 {dimension_numbers = #tpu.dot_dimension_numbers<[1], [1], [0], [0], [0, 0, 1, 0], [], []>} : vector<8x32xf32>, vector<32x32xf32>, vector<8x32xf32> -> vector<8x32xf32>
    %71 = vector.broadcast %68 : vector<1x32xf32> to vector<8x32xf32>
    %72 = arith.mulf %70, %71 : vector<8x32xf32>
    %cst_44 = arith.constant dense<0.000000e+00> : vector<8xf32>
    %73 = vector.multi_reduction <add>, %72, %cst_44 [1] : vector<8x32xf32> to vector<8xf32>
    %74 = vector.shape_cast %73 : vector<8xf32> to vector<8x1xf32>
    %cst_45 = arith.constant dense<0.000000e+00> : vector<1x8xf32>
    %75 = tpu.matmul %67, %70, %cst_45 {dimension_numbers = #tpu.dot_dimension_numbers<[1], [1], [0], [0], [0, 0, 1, 0], [], []>} : vector<1x32xf32>, vector<8x32xf32>, vector<1x8xf32> -> vector<1x8xf32>
    %76 = vector.broadcast %74 : vector<8x1xf32> to vector<8x8xf32>
    %77 = vector.broadcast %75 : vector<1x8xf32> to vector<8x8xf32>
    %78 = arith.addf %76, %77 : vector<8x8xf32>
    %cst_46 = arith.constant 0.000000e+00 : f32
    %79 = vector.broadcast %cst_46 : f32 to vector<8x8xf32>
    %80 = arith.cmpf ogt, %78, %79 : vector<8x8xf32>
    %cst_47 = arith.constant 0.00999999977 : f32
    %81 = vector.broadcast %cst_47 : f32 to vector<8x8xf32>
    %82 = arith.mulf %81, %78 : vector<8x8xf32>
    %83 = arith.select %80, %78, %82 : vector<8x8xi1>, vector<8x8xf32>
    %cst_48 = arith.constant -1.000000e+30 : f32
    %84 = vector.broadcast %cst_48 : f32 to vector<8x8xf32>
    %85 = arith.select %8, %83, %84 : vector<8x8xi1>, vector<8x8xf32>
    %cst_49 = arith.constant dense<0xFF800000> : vector<8xf32>
    %86 = vector.multi_reduction <maximumf>, %85, %cst_49 [1] : vector<8x8xf32> to vector<8xf32>
    %87 = vector.shape_cast %86 : vector<8xf32> to vector<8x1xf32>
    %88 = vector.broadcast %87 : vector<8x1xf32> to vector<8x8xf32>
    %89 = arith.subf %85, %88 : vector<8x8xf32>
    %90 = math.exp %89 : vector<8x8xf32>
    %91 = arith.mulf %90, %10 : vector<8x8xf32>
    %cst_50 = arith.constant dense<0.000000e+00> : vector<8xf32>
    %92 = vector.multi_reduction <add>, %91, %cst_50 [1] : vector<8x8xf32> to vector<8xf32>
    %93 = vector.shape_cast %92 : vector<8xf32> to vector<8x1xf32>
    %cst_51 = arith.constant 1.000000e-30 : f32
    %94 = vector.broadcast %cst_51 : f32 to vector<8x1xf32>
    %95 = arith.maximumf %93, %94 : vector<8x1xf32>
    %96 = vector.broadcast %95 : vector<8x1xf32> to vector<8x8xf32>
    %97 = arith.divf %91, %96 : vector<8x8xf32>
    %cst_52 = arith.constant dense<0.000000e+00> : vector<8x32xf32>
    %98 = tpu.matmul %97, %70, %cst_52 {dimension_numbers = #tpu.dot_dimension_numbers<[1], [0], [0], [1], [0, 0, 1, 1], [], []>} : vector<8x8xf32>, vector<8x32xf32>, vector<8x32xf32> -> vector<8x32xf32>
    %99 = arith.addf %69, %98 : vector<8x32xf32>
    %cst_53 = arith.constant 0.000000e+00 : f32
    %100 = vector.broadcast %cst_53 : f32 to vector<8x32xf32>
    %101 = arith.maximumf %99, %100 : vector<8x32xf32>
    %102 = arith.addf %48, %101 : vector<8x32xf32>
    %cst_54 = arith.constant dense<0xFF800000> : vector<1xf32>
    %103 = vector.multi_reduction <maximumf>, %87, %cst_54 [0] : vector<8x1xf32> to vector<1xf32>
    %104 = vector.shape_cast %103 : vector<1xf32> to vector<1x1xf32>
    %105 = vector.broadcast %104 : vector<1x1xf32> to vector<8x1xf32>
    %106 = arith.subf %87, %105 : vector<8x1xf32>
    %107 = math.exp %106 : vector<8x1xf32>
    %108 = vector.broadcast %107 : vector<8x1xf32> to vector<8x8xf32>
    %109 = arith.mulf %91, %108 : vector<8x8xf32>
    %cst_55 = arith.constant dense<0.000000e+00> : vector<8xf32>
    %110 = vector.multi_reduction <add>, %109, %cst_55 [1] : vector<8x8xf32> to vector<8xf32>
    %111 = vector.shape_cast %110 : vector<8xf32> to vector<8x1xf32>
    %cst_56 = arith.constant dense<0.000000e+00> : vector<1xf32>
    %112 = vector.multi_reduction <add>, %111, %cst_56 [0] : vector<8x1xf32> to vector<1xf32>
    %113 = vector.shape_cast %112 : vector<1xf32> to vector<1x1xf32>
    %cst_57 = arith.constant 1.000000e-30 : f32
    %114 = vector.broadcast %cst_57 : f32 to vector<1x1xf32>
    %115 = arith.maximumf %113, %114 : vector<1x1xf32>
    %116 = vector.broadcast %115 : vector<1x1xf32> to vector<8x8xf32>
    %117 = arith.divf %109, %116 : vector<8x8xf32>
    %c0_58 = arith.constant 0 : index
    %c0_59 = arith.constant 0 : index
    %118 = vector.load %arg17[%c0_58, %c0_59] : memref<8x8xf32, #tpu.memory_space<vmem>>, vector<8x8xf32>
    tpu.vector_store %arg17[%c0_58, %c0_59], %117 {strides = array<i32>} : memref<8x8xf32, #tpu.memory_space<vmem>>, vector<8x8xf32>,
    %c0_60 = arith.constant 0 : index
    %c0_61 = arith.constant 0 : index
    %119 = vector.load %arg12[%c0_60, %c0_61] : memref<128x32xf32, #tpu.memory_space<vmem>>, vector<128x32xf32>
    %cst_62 = arith.constant dense<0.000000e+00> : vector<8x128xf32>
    %120 = tpu.matmul %102, %119, %cst_62 {dimension_numbers = #tpu.dot_dimension_numbers<[1], [1], [0], [0], [0, 0, 1, 0], [], []>} : vector<8x32xf32>, vector<128x32xf32>, vector<8x128xf32> -> vector<8x128xf32>
    %c0_63 = arith.constant 0 : index
    %c0_64 = arith.constant 0 : index
    %121 = vector.load %arg13[%c0_63, %c0_64] : memref<1x128xf32, #tpu.memory_space<vmem>>, vector<1x128xf32>
    %122 = vector.broadcast %121 : vector<1x128xf32> to vector<8x128xf32>
    %123 = arith.addf %120, %122 : vector<8x128xf32>
    %c0_65 = arith.constant 0 : index
    %c0_66 = arith.constant 0 : index
    %124 = vector.load %arg15[%c0_65, %c0_66] : memref<8x128xf32, #tpu.memory_space<vmem>>, vector<8x128xf32>
    tpu.vector_store %arg15[%c0_65, %c0_66], %123 {strides = array<i32>} : memref<8x128xf32, #tpu.memory_space<vmem>>, vector<8x128xf32>,
    return
  }
  func.func @transform_0(%arg0: i32) -> (i32, i32) {
    %c0_i32 = arith.constant 0 : i32
    %c0_i32_0 = arith.constant 0 : i32
    %c0_i32_1 = arith.constant 0 : i32
    return %c0_i32, %c0_i32_0 : i32, i32
  }
  func.func @transform_1(%arg0: i32) -> (i32, i32) {
    %c0_i32 = arith.constant 0 : i32
    %c0_i32_0 = arith.constant 0 : i32
    %c0_i32_1 = arith.constant 0 : i32
    return %c0_i32, %c0_i32_0 : i32, i32
  }
  func.func @transform_2(%arg0: i32) -> (i32, i32) {
    %c0_i32 = arith.constant 0 : i32
    %c0_i32_0 = arith.constant 0 : i32
    %c0_i32_1 = arith.constant 0 : i32
    return %c0_i32, %c0_i32_0 : i32, i32
  }
  func.func @transform_3(%arg0: i32) -> (i32, i32) {
    %c0_i32 = arith.constant 0 : i32
    %c0_i32_0 = arith.constant 0 : i32
    %c0_i32_1 = arith.constant 0 : i32
    return %c0_i32, %c0_i32_0 : i32, i32
  }
  func.func @transform_4(%arg0: i32) -> (i32, i32) {
    %c0_i32 = arith.constant 0 : i32
    %c0_i32_0 = arith.constant 0 : i32
    %c0_i32_1 = arith.constant 0 : i32
    return %c0_i32, %c0_i32_0 : i32, i32
  }
  func.func @transform_5(%arg0: i32) -> (i32, i32) {
    %c0_i32 = arith.constant 0 : i32
    %c0_i32_0 = arith.constant 0 : i32
    %c0_i32_1 = arith.constant 0 : i32
    return %c0_i32, %c0_i32_0 : i32, i32
  }
  func.func @transform_6(%arg0: i32) -> (i32, i32) {
    %c0_i32 = arith.constant 0 : i32
    %c0_i32_0 = arith.constant 0 : i32
    %c0_i32_1 = arith.constant 0 : i32
    return %c0_i32, %c0_i32_0 : i32, i32
  }
  func.func @transform_7(%arg0: i32) -> (i32, i32) {
    %c0_i32 = arith.constant 0 : i32
    %c0_i32_0 = arith.constant 0 : i32
    %c0_i32_1 = arith.constant 0 : i32
    return %c0_i32, %c0_i32_0 : i32, i32
  }
  func.func @transform_8(%arg0: i32) -> (i32, i32) {
    %c0_i32 = arith.constant 0 : i32
    %c0_i32_0 = arith.constant 0 : i32
    %c0_i32_1 = arith.constant 0 : i32
    return %c0_i32, %c0_i32_0 : i32, i32
  }
  func.func @transform_9(%arg0: i32) -> (i32, i32) {
    %c0_i32 = arith.constant 0 : i32
    %c0_i32_0 = arith.constant 0 : i32
    %c0_i32_1 = arith.constant 0 : i32
    return %c0_i32, %c0_i32_0 : i32, i32
  }
  func.func @transform_10(%arg0: i32) -> (i32, i32) {
    %c0_i32 = arith.constant 0 : i32
    %c0_i32_0 = arith.constant 0 : i32
    %c0_i32_1 = arith.constant 0 : i32
    return %c0_i32, %c0_i32_0 : i32, i32
  }
  func.func @transform_11(%arg0: i32) -> (i32, i32) {
    %c0_i32 = arith.constant 0 : i32
    %c0_i32_0 = arith.constant 0 : i32
    %c0_i32_1 = arith.constant 0 : i32
    return %c0_i32, %c0_i32_0 : i32, i32
  }
  func.func @transform_12(%arg0: i32) -> (i32, i32) {
    %c0_i32 = arith.constant 0 : i32
    %c0_i32_0 = arith.constant 0 : i32
    %c0_i32_1 = arith.constant 0 : i32
    return %c0_i32, %c0_i32_0 : i32, i32
  }
  func.func @transform_13(%arg0: i32) -> (i32, i32) {
    %c0_i32 = arith.constant 0 : i32
    %c0_i32_0 = arith.constant 0 : i32
    %c0_i32_1 = arith.constant 0 : i32
    return %c0_i32, %c0_i32_0 : i32, i32
  }
  func.func @transform_14(%arg0: i32) -> (i32, i32) {
    %c0_i32 = arith.constant 0 : i32
    %c0_i32_0 = arith.constant 0 : i32
    %c0_i32_1 = arith.constant 0 : i32
    return %c0_i32, %c0_i32_0 : i32, i32
  }
  func.func @transform_15(%arg0: i32) -> (i32, i32) {
    %c0_i32 = arith.constant 0 : i32
    %c0_i32_0 = arith.constant 0 : i32
    %c0_i32_1 = arith.constant 0 : i32
    return %c0_i32, %c0_i32_0 : i32, i32
  }
  func.func @transform_16(%arg0: i32) -> (i32, i32) {
    %c0_i32 = arith.constant 0 : i32
    %c0_i32_0 = arith.constant 0 : i32
    %c0_i32_1 = arith.constant 0 : i32
    return %c0_i32, %c0_i32_0 : i32, i32
  }
}

</mosaic_0001>

<llo_original>
// kernel: tpu_custom_call.1
$region0: #{tpu_custom_call.1}
  #allocation0 [shape = 'u32[]', space=smem, size = 0x4, offset = 0x4, fixed_abs, tag = 'smem constant byte address 0x4 - core index']
  #allocation1 [shape = 'u32[144,128]{1,0:T(1,128)}', space=vmem, size = 0x12000, scoped, tag = 'internal scratch']
  %s0 = inlined_call_operand.vmem [shape: f32[8,16], index: 0, kind: input, shape index: {}]
  %s1 = inlined_call_operand.vmem [shape: f32[32,16], index: 1, kind: input, shape index: {}]
  %s2 = inlined_call_operand.vmem [shape: f32[1,32], index: 2, kind: input, shape index: {}]
  %s3 = inlined_call_operand.vmem [shape: f32[32,32], index: 3, kind: input, shape index: {}]
  %s4 = inlined_call_operand.vmem [shape: f32[32,32], index: 4, kind: input, shape index: {}]
  %s5 = inlined_call_operand.vmem [shape: f32[1,32], index: 5, kind: input, shape index: {}]
  %s6 = inlined_call_operand.vmem [shape: f32[1,32], index: 6, kind: input, shape index: {}]
  %s7 = inlined_call_operand.vmem [shape: f32[32,32], index: 7, kind: input, shape index: {}]
  %s8 = inlined_call_operand.vmem [shape: f32[32,32], index: 8, kind: input, shape index: {}]
  %s9 = inlined_call_operand.vmem [shape: f32[1,32], index: 9, kind: input, shape index: {}]
  %s10 = inlined_call_operand.vmem [shape: f32[1,32], index: 10, kind: input, shape index: {}]
  %s11 = inlined_call_operand.vmem [shape: f32[128,32], index: 11, kind: input, shape index: {}]
  %s12 = inlined_call_operand.vmem [shape: f32[1,128], index: 12, kind: input, shape index: {}]
  %s13 = inlined_call_operand.vmem [shape: f32[8,8], index: 13, kind: input, shape index: {}]
  %s14 = inlined_call_operand.hbm [shape: f32[8,128], index: 14, kind: output, shape index: {0}]
  %s15 = inlined_call_operand.hbm [shape: f32[8,8], index: 15, kind: output, shape index: {1}]
  %s16 = inlined_call_operand.hbm [shape: f32[8,8], index: 16, kind: output, shape index: {2}]
  %17 = xla_tuple %s14, %s15, %s16
  %s18 = sld [smem:[#allocation0]]
  $region82: #{tpu_custom_call.1} parent=0
    _
  %s20 = ssub.s32 1, %s18
  %s21 = scalar_select 0, %s20, %s18
  $region1: #{tpu_custom_call.1} parent=0
    #allocation2 [shape = 'u8[4096]{0}', space=vmem, size = 0x1000, scoped, tag = 'output window, operand 0, single buffered']
    #allocation3 [shape = 's32[1]{0}', space=sflag, size = 0x4, scoped, tag = 'scoped memory for tpu_custom_call.1']
    #allocation4 [shape = 'u8[4096]{0}', space=vmem, size = 0x1000, scoped, tag = 'output window, operand 1, single buffered']
    #allocation5 [shape = 's32[1]{0}', space=sflag, size = 0x4, scoped, tag = 'scoped memory for tpu_custom_call.1']
    #allocation6 [shape = 'u8[4096]{0}', space=vmem, size = 0x1000, scoped, tag = 'output window, operand 2, single buffered']
    %22 = vsyncpa [#allocation3], 0
    %23 = vsyncpa [#allocation5], 0
    // Predicated region
    $region2: #{tpu_custom_call.1} parent=1 // pred_check
      _
    $region3: #{tpu_custom_call.1} parent=1 // pred_check_branch
      %25 = sbr.rel (0) target = $region5
    $region4: #{tpu_custom_call.1} parent=1 // pred_region
      _
    $region5: #{tpu_custom_call.1} parent=1 // pred_fallthru
      _
    // Predicated region
    $region6: #{tpu_custom_call.1} parent=1 // pred_check
      _
    $region7: #{tpu_custom_call.1} parent=1 // pred_check_branch
      %27 = sbr.rel (0) target = $region9
    $region8: #{tpu_custom_call.1} parent=1 // pred_region
      _
    $region9: #{tpu_custom_call.1} parent=1 // pred_fallthru
      _
    // Predicated region
    $region10: #{tpu_custom_call.1} parent=1 // pred_check
      _
    $region11: #{tpu_custom_call.1} parent=1 // pred_check_branch
      %29 = sbr.rel (0) target = $region13
    $region12: #{tpu_custom_call.1} parent=1 // pred_region
      _
    $region13: #{tpu_custom_call.1} parent=1 // pred_fallthru
      _
    // Predicated region
    $region14: #{tpu_custom_call.1} parent=1 // pred_check
      _
    $region15: #{tpu_custom_call.1} parent=1 // pred_check_branch
      %31 = sbr.rel (0) target = $region17
    $region16: #{tpu_custom_call.1} parent=1 // pred_region
      _
    $region17: #{tpu_custom_call.1} parent=1 // pred_fallthru
      _
    // Predicated region
    $region18: #{tpu_custom_call.1} parent=1 // pred_check
      _
    $region19: #{tpu_custom_call.1} parent=1 // pred_check_branch
      %33 = sbr.rel (0) target = $region21
    $region20: #{tpu_custom_call.1} parent=1 // pred_region
      _
    $region21: #{tpu_custom_call.1} parent=1 // pred_fallthru
      _
    // Predicated region
    $region22: #{tpu_custom_call.1} parent=1 // pred_check
      _
    $region23: #{tpu_custom_call.1} parent=1 // pred_check_branch
      %35 = sbr.rel (0) target = $region25
    $region24: #{tpu_custom_call.1} parent=1 // pred_region
      _
    $region25: #{tpu_custom_call.1} parent=1 // pred_fallthru
      _
    // Predicated region
    $region26: #{tpu_custom_call.1} parent=1 // pred_check
      _
    $region27: #{tpu_custom_call.1} parent=1 // pred_check_branch
      %37 = sbr.rel (0) target = $region29
    $region28: #{tpu_custom_call.1} parent=1 // pred_region
      _
    $region29: #{tpu_custom_call.1} parent=1 // pred_fallthru
      _
    // Predicated region
    $region30: #{tpu_custom_call.1} parent=1 // pred_check
      _
    $region31: #{tpu_custom_call.1} parent=1 // pred_check_branch
      %39 = sbr.rel (0) target = $region33
    $region32: #{tpu_custom_call.1} parent=1 // pred_region
      _
    $region33: #{tpu_custom_call.1} parent=1 // pred_fallthru
      _
    // Predicated region
    $region34: #{tpu_custom_call.1} parent=1 // pred_check
      _
    $region35: #{tpu_custom_call.1} parent=1 // pred_check_branch
      %41 = sbr.rel (0) target = $region37
    $region36: #{tpu_custom_call.1} parent=1 // pred_region
      _
    $region37: #{tpu_custom_call.1} parent=1 // pred_fallthru
      _
    // Predicated region
    $region38: #{tpu_custom_call.1} parent=1 // pred_check
      _
    $region39: #{tpu_custom_call.1} parent=1 // pred_check_branch
      %43 = sbr.rel (0) target = $region41
    $region40: #{tpu_custom_call.1} parent=1 // pred_region
      _
    $region41: #{tpu_custom_call.1} parent=1 // pred_fallthru
      _
    // Predicated region
    $region42: #{tpu_custom_call.1} parent=1 // pred_check
      _
    $region43: #{tpu_custom_call.1} parent=1 // pred_check_branch
      %45 = sbr.rel (0) target = $region45
    $region44: #{tpu_custom_call.1} parent=1 // pred_region
      _
    $region45: #{tpu_custom_call.1} parent=1 // pred_fallthru
      _
    // Predicated region
    $region46: #{tpu_custom_call.1} parent=1 // pred_check
      _
    $region47: #{tpu_custom_call.1} parent=1 // pred_check_branch
      %47 = sbr.rel (0) target = $region49
    $region48: #{tpu_custom_call.1} parent=1 // pred_region
      _
    $region49: #{tpu_custom_call.1} parent=1 // pred_fallthru
      _
    // Predicated region
    $region50: #{tpu_custom_call.1} parent=1 // pred_check
      _
    $region51: #{tpu_custom_call.1} parent=1 // pred_check_branch
      %49 = sbr.rel (0) target = $region53
    $region52: #{tpu_custom_call.1} parent=1 // pred_region
      _
    $region53: #{tpu_custom_call.1} parent=1 // pred_fallthru
      _
    // Predicated region
    $region54: #{tpu_custom_call.1} parent=1 // pred_check
      _
    $region55: #{tpu_custom_call.1} parent=1 // pred_check_branch
      %51 = sbr.rel (0) target = $region57
    $region56: #{tpu_custom_call.1} parent=1 // pred_region
      _
    $region57: #{tpu_custom_call.1} parent=1 // pred_fallthru
      _
    %v52 = vld [vmem:[%s0] sm:$0xff]
    %v53 = vld [vmem:[%s1] sm:$0xff]
    %v54 = vld [vmem:[%s1 + $0x8] sm:$0xff]
    %v55 = vld [vmem:[%s1 + $0x10] sm:$0xff]
    %v56 = vld [vmem:[%s1 + $0x18] sm:$0xff]
    %v57 = vld [vmem:[%s2] sm:$0x1]
    %v59 = vlaneseq
    %v60 = vshrl.u32 %v59, 7
    %v61 = vsub.s32 0, %v60
    %v62 = vrot.slane %v57, %v61
    %vm64 = vcmask 130048
    %v66 = vsel %vm64, %v52, 0
    %v69 = vsel %vm64, %v53, 0
    %v72 = vsel %vm64, %v54, 0
    %v75 = vsel %vm64, %v55, 0
    %v78 = vsel %vm64, %v56, 0
    %80 = vmatprep.subr.mxu0 0.0
    %81 = vmatpush1.xpose.msra.mxu0 %v69
    %82 = vmatprep.subr.mxu0 0.0
    %83 = vmatpush1.xpose.msra.mxu0 %v72
    %84 = vmatprep.subr.mxu0 0.0
    %85 = vmatpush1.xpose.msra.mxu0 %v75
    %86 = vmatprep.subr.mxu0 0.0
    %87 = vmatpush1.xpose.msra.mxu0 %v78
    %88 = vmatprep.subr.mxu0 0.0
    %89 = vmatpush1.xpose.msra.mxu0 0.0
    %90 = vmatprep.subr.mxu0 0.0
    %91 = vmatpush1.xpose.msra.mxu0 0.0
    %92 = vmatprep.subr.mxu0 0.0
    %93 = vmatpush1.xpose.msra.mxu0 0.0
    %94 = vmatprep.subr.mxu0 0.0
    %95 = vmatpush1.xpose.msra.mxu0 0.0
    %96 = vmatprep.subr.mxu0 0.0
    %97 = vmatpush1.xpose.msra.mxu0 0.0
    %98 = vmatprep.subr.mxu0 0.0
    %99 = vmatpush1.xpose.msra.mxu0 0.0
    %100 = vmatprep.subr.mxu0 0.0
    %101 = vmatpush1.xpose.msra.mxu0 0.0
    %102 = vmatprep.subr.mxu0 0.0
    %103 = vmatpush1.xpose.msra.mxu0 0.0
    %104 = vmatprep.subr.mxu0 0.0
    %105 = vmatpush1.xpose.msra.mxu0 0.0
    %106 = vmatprep.subr.mxu0 0.0
    %107 = vmatpush1.xpose.msra.mxu0 0.0
    %108 = vmatprep.subr.mxu0 0.0
    %109 = vmatpush1.xpose.msra.mxu0 0.0
    %110 = vmatprep.subr.mxu0 0.0
    %111 = vmatpush1.xpose.msra.mxu0 0.0
    %112 = vmatprep.subr.mxu0 0.0
    %113 = vmatpush1.xpose.msra.mxu0 0.0
    %114 = vmatprep.subr.mxu0 0.0
    %115 = vmatpush1.xpose.msra.mxu0 0.0
    %116 = vmatprep.subr.mxu0 0.0
    %117 = vmatpush1.xpose.msra.mxu0 0.0
    %118 = vmatprep.subr.mxu0 0.0
    %119 = vmatpush1.xpose.msra.mxu0 0.0
    %120 = vmatprep.subr.mxu0 0.0
    %121 = vmatpush1.xpose.msra.mxu0 0.0
    %122 = vmatprep.subr.mxu0 0.0
    %123 = vmatpush1.xpose.msra.mxu0 0.0
    %124 = vmatprep.subr.mxu0 0.0
    %125 = vmatpush1.xpose.msra.mxu0 0.0
    %126 = vmatprep.subr.mxu0 0.0
    %127 = vmatpush1.xpose.msra.mxu0 0.0
    %128 = vmatprep.subr.mxu0 0.0
    %129 = vmatpush1.xpose.msra.mxu0 0.0
    %130 = vmatprep.subr.mxu0 0.0
    %131 = vmatpush1.xpose.msra.mxu0 0.0
    %132 = vmatprep.subr.mxu0 0.0
    %133 = vmatpush1.xpose.msra.mxu0 0.0
    %134 = vmatprep.subr.mxu0 0.0
    %135 = vmatpush1.xpose.msra.mxu0 0.0
    %136 = vmatprep.subr.mxu0 0.0
    %137 = vmatpush1.xpose.msra.mxu0 0.0
    %138 = vmatprep.subr.mxu0 0.0
    %139 = vmatpush1.xpose.msra.mxu0 0.0
    %140 = vmatprep.subr.mxu0 0.0
    %141 = vmatpush1.xpose.msra.mxu0 0.0
    %142 = vmatprep.subr.mxu0 0.0
    %143 = vmatpush1.xpose.msra.mxu0 0.0
    %144 = vmatprep.mubr.f32.mxu0 0.0
    %145 = vmatmul.mubr.f32.gmra.mrb[0].mxu0 %v66
    %v146 = vpop.f32.mrb[0].mxu0
    %v147 = vadd.f32 %v62, %v146
    %v148 = vpop.f32.mrb[0].mxu0
    %149 = vdwg.mxu0
    %v150 = vld [vmem:[%s13] sm:$0xff]
    %vm151 = vcmp.gt.f32.partialorder %v150, 0.0
    %v152 = vsel %vm151, 1, 0
    %v153 = vcvt.s32.f32 %v152
    %v154 = vld [vmem:[%s3] sm:$0xff]
    %v155 = vld [vmem:[%s3 + $0x8] sm:$0xff]
    %v156 = vld [vmem:[%s3 + $0x10] sm:$0xff]
    %v157 = vld [vmem:[%s3 + $0x18] sm:$0xff]
    %v158 = vld [vmem:[%s4] sm:$0xff]
    %v159 = vld [vmem:[%s4 + $0x8] sm:$0xff]
    %v160 = vld [vmem:[%s4 + $0x10] sm:$0xff]
    %v161 = vld [vmem:[%s4 + $0x18] sm:$0xff]
    %v162 = vld [vmem:[%s5] sm:$0x1]
    %v163 = vld [vmem:[%s6] sm:$0x1]
    %vm164 = vcmask 261120
    %v166 = vsel %vm164, %v147, 0
    %v169 = vsel %vm164, %v158, 0
    %v172 = vsel %vm164, %v159, 0
    %v175 = vsel %vm164, %v160, 0
    %v178 = vsel %vm164, %v161, 0
    %180 = vmatprep.subr.mxu0 0.0
    %181 = vmatpush1.xpose.msra.mxu0 %v169
    %182 = vmatprep.subr.mxu0 0.0
    %183 = vmatpush1.xpose.msra.mxu0 %v172
    %184 = vmatprep.subr.mxu0 0.0
    %185 = vmatpush1.xpose.msra.mxu0 %v175
    %186 = vmatprep.subr.mxu0 0.0
    %187 = vmatpush1.xpose.msra.mxu0 %v178
    %188 = vmatprep.subr.mxu0 0.0
    %189 = vmatpush1.xpose.msra.mxu0 0.0
    %190 = vmatprep.subr.mxu0 0.0
    %191 = vmatpush1.xpose.msra.mxu0 0.0
    %192 = vmatprep.subr.mxu0 0.0
    %193 = vmatpush1.xpose.msra.mxu0 0.0
    %194 = vmatprep.subr.mxu0 0.0
    %195 = vmatpush1.xpose.msra.mxu0 0.0
    %196 = vmatprep.subr.mxu0 0.0
    %197 = vmatpush1.xpose.msra.mxu0 0.0
    %198 = vmatprep.subr.mxu0 0.0
    %199 = vmatpush1.xpose.msra.mxu0 0.0
    %200 = vmatprep.subr.mxu0 0.0
    %201 = vmatpush1.xpose.msra.mxu0 0.0
    %202 = vmatprep.subr.mxu0 0.0
    %203 = vmatpush1.xpose.msra.mxu0 0.0
    %204 = vmatprep.subr.mxu0 0.0
    %205 = vmatpush1.xpose.msra.mxu0 0.0
    %206 = vmatprep.subr.mxu0 0.0
    %207 = vmatpush1.xpose.msra.mxu0 0.0
    %208 = vmatprep.subr.mxu0 0.0
    %209 = vmatpush1.xpose.msra.mxu0 0.0
    %210 = vmatprep.subr.mxu0 0.0
    %211 = vmatpush1.xpose.msra.mxu0 0.0
    %212 = vmatprep.subr.mxu0 0.0
    %213 = vmatpush1.xpose.msra.mxu0 0.0
    %214 = vmatprep.subr.mxu0 0.0
    %215 = vmatpush1.xpose.msra.mxu0 0.0
    %216 = vmatprep.subr.mxu0 0.0
    %217 = vmatpush1.xpose.msra.mxu0 0.0
    %218 = vmatprep.subr.mxu0 0.0
    %219 = vmatpush1.xpose.msra.mxu0 0.0
    %220 = vmatprep.subr.mxu0 0.0
    %221 = vmatpush1.xpose.msra.mxu0 0.0
    %222 = vmatprep.subr.mxu0 0.0
    %223 = vmatpush1.xpose.msra.mxu0 0.0
    %224 = vmatprep.subr.mxu0 0.0
    %225 = vmatpush1.xpose.msra.mxu0 0.0
    %226 = vmatprep.subr.mxu0 0.0
    %227 = vmatpush1.xpose.msra.mxu0 0.0
    %228 = vmatprep.subr.mxu0 0.0
    %229 = vmatpush1.xpose.msra.mxu0 0.0
    %230 = vmatprep.subr.mxu0 0.0
    %231 = vmatpush1.xpose.msra.mxu0 0.0
    %232 = vmatprep.subr.mxu0 0.0
    %233 = vmatpush1.xpose.msra.mxu0 0.0
    %234 = vmatprep.subr.mxu0 0.0
    %235 = vmatpush1.xpose.msra.mxu0 0.0
    %236 = vmatprep.subr.mxu0 0.0
    %237 = vmatpush1.xpose.msra.mxu0 0.0
    %238 = vmatprep.subr.mxu0 0.0
    %239 = vmatpush1.xpose.msra.mxu0 0.0
    %240 = vmatprep.subr.mxu0 0.0
    %241 = vmatpush1.xpose.msra.mxu0 0.0
    %242 = vmatprep.subr.mxu0 0.0
    %243 = vmatpush1.xpose.msra.mxu0 0.0
    %244 = vmatprep.mubr.f32.mxu0 0.0
    %245 = vmatmul.mubr.f32.gmra.mrb[0].mxu0 %v166
    %v246 = vpop.f32.mrb[0].mxu0
    %v247 = vadd.f32 0.0, %v246
    %v248 = vpop.f32.mrb[0].mxu0
    %249 = vdwg.mxu0
    %v251 = vlaneseq
    %v252 = vshrl.u32 %v251, 7
    %v253 = vsub.s32 0, %v252
    %v254 = vrot.slane %v163, %v253
    %v256 = vmul.f32 %v247, %v254
    %v257 = vsel %vm164, %v256, 0.0
    %258 = vadd.xlane.f32.xlu0 %v257
    %v259 = vpop.xlane.xlu0 %258
    %v261 = vsel %vm164, %v162, 0
    %v264 = vsel %vm164, %v247, 0
    %266 = vmatprep.subr.mxu0 0.0
    %267 = vmatpush1.xpose.msra.mxu0 %v264
    %268 = vmatprep.subr.mxu0 0.0
    %269 = vmatpush1.xpose.msra.mxu0 0.0
    %270 = vmatprep.subr.mxu0 0.0
    %271 = vmatpush1.xpose.msra.mxu0 0.0
    %272 = vmatprep.subr.mxu0 0.0
    %273 = vmatpush1.xpose.msra.mxu0 0.0
    %274 = vmatprep.subr.mxu0 0.0
    %275 = vmatpush1.xpose.msra.mxu0 0.0
    %276 = vmatprep.subr.mxu0 0.0
    %277 = vmatpush1.xpose.msra.mxu0 0.0
    %278 = vmatprep.subr.mxu0 0.0
    %279 = vmatpush1.xpose.msra.mxu0 0.0
    %280 = vmatprep.subr.mxu0 0.0
    %281 = vmatpush1.xpose.msra.mxu0 0.0
    %282 = vmatprep.subr.mxu0 0.0
    %283 = vmatpush1.xpose.msra.mxu0 0.0
    %284 = vmatprep.subr.mxu0 0.0
    %285 = vmatpush1.xpose.msra.mxu0 0.0
    %286 = vmatprep.subr.mxu0 0.0
    %287 = vmatpush1.xpose.msra.mxu0 0.0
    %288 = vmatprep.subr.mxu0 0.0
    %289 = vmatpush1.xpose.msra.mxu0 0.0
    %290 = vmatprep.subr.mxu0 0.0
    %291 = vmatpush1.xpose.msra.mxu0 0.0
    %292 = vmatprep.subr.mxu0 0.0
    %293 = vmatpush1.xpose.msra.mxu0 0.0
    %294 = vmatprep.subr.mxu0 0.0
    %295 = vmatpush1.xpose.msra.mxu0 0.0
    %296 = vmatprep.subr.mxu0 0.0
    %297 = vmatpush1.xpose.msra.mxu0 0.0
    %298 = vmatprep.subr.mxu0 0.0
    %299 = vmatpush1.xpose.msra.mxu0 0.0
    %300 = vmatprep.subr.mxu0 0.0
    %301 = vmatpush1.xpose.msra.mxu0 0.0
    %302 = vmatprep.subr.mxu0 0.0
    %303 = vmatpush1.xpose.msra.mxu0 0.0
    %304 = vmatprep.subr.mxu0 0.0
    %305 = vmatpush1.xpose.msra.mxu0 0.0
    %306 = vmatprep.subr.mxu0 0.0
    %307 = vmatpush1.xpose.msra.mxu0 0.0
    %308 = vmatprep.subr.mxu0 0.0
    %309 = vmatpush1.xpose.msra.mxu0 0.0
    %310 = vmatprep.subr.mxu0 0.0
    %311 = vmatpush1.xpose.msra.mxu0 0.0
    %312 = vmatprep.subr.mxu0 0.0
    %313 = vmatpush1.xpose.msra.mxu0 0.0
    %314 = vmatprep.subr.mxu0 0.0
    %315 = vmatpush1.xpose.msra.mxu0 0.0
    %316 = vmatprep.subr.mxu0 0.0
    %317 = vmatpush1.xpose.msra.mxu0 0.0
    %318 = vmatprep.subr.mxu0 0.0
    %319 = vmatpush1.xpose.msra.mxu0 0.0
    %320 = vmatprep.subr.mxu0 0.0
    %321 = vmatpush1.xpose.msra.mxu0 0.0
    %322 = vmatprep.subr.mxu0 0.0
    %323 = vmatpush1.xpose.msra.mxu0 0.0
    %324 = vmatprep.subr.mxu0 0.0
    %325 = vmatpush1.xpose.msra.mxu0 0.0
    %326 = vmatprep.subr.mxu0 0.0
    %327 = vmatpush1.xpose.msra.mxu0 0.0
    %328 = vmatprep.subr.mxu0 0.0
    %329 = vmatpush1.xpose.msra.mxu0 0.0
    %330 = vmatprep.mubr.f32.mxu0 0.0
    %331 = vmatmul.mubr.f32.gmra.mrb[0].mxu0 %v261
    %v332 = vpop.f32.mrb[0].mxu0
    %v333 = vadd.f32 0.0, %v332
    %v334 = vpop.f32.mrb[0].mxu0
    %335 = vdwg.mxu0
    %v336 = vlaneseq
    %v337 = vshrl.u32 %v336, 7
    %v338 = vsub.s32 0, %v337
    %v339 = vrot.slane %v333, %v338
    %v340 = vadd.f32 %v259, %v339
    %vm341 = vcmp.gt.f32.partialorder %v340, 0.0
    %v342 = vmul.f32 %v340, 0.01
    %v343 = vsel %vm341, %v340, %v342
    %v344 = vsel %vm151, %v343, -1e+30
    %vm345 = vcmask 64512
    %v346 = vsel %vm345, %v344, -inf
    %347 = vmax.xlane.f32.xlu0 %v346
    %v348 = vpop.xlane.xlu0 %347
    %v349 = vsub.f32 %v344, %v348
    %v350 = vmul.f32 %v349, 1.442695
    %v351 = vpow.pop %v350
    %v352 = vmul.f32 %v351, %v153
    %v353 = vsel %vm345, %v352, 0.0
    %354 = vadd.xlane.f32.xlu0 %v353
    %v355 = vpop.xlane.xlu0 %354
    %v356 = vmax.f32 %v355, 1e-30
    %v357 = vrcp.pop %v356
    %v358 = vmul.f32 %v352, %v357
    %v360 = vsel %vm345, %v358, 0
    %362 = vmatprep.subr.mxu0 0.0
    %363 = vmatpush1.msra.mxu0 %v247
    %364 = vmatprep.subr.mxu0 0.0
    %365 = vmatpush1.msra.mxu0 0.0
    %366 = vmatprep.subr.mxu0 0.0
    %367 = vmatpush1.msra.mxu0 0.0
    %368 = vmatprep.subr.mxu0 0.0
    %369 = vmatpush1.msra.mxu0 0.0
    %370 = vmatprep.subr.mxu0 0.0
    %371 = vmatpush1.msra.mxu0 0.0
    %372 = vmatprep.subr.mxu0 0.0
    %373 = vmatpush1.msra.mxu0 0.0
    %374 = vmatprep.subr.mxu0 0.0
    %375 = vmatpush1.msra.mxu0 0.0
    %376 = vmatprep.subr.mxu0 0.0
    %377 = vmatpush1.msra.mxu0 0.0
    %378 = vmatprep.subr.mxu0 0.0
    %379 = vmatpush1.msra.mxu0 0.0
    %380 = vmatprep.subr.mxu0 0.0
    %381 = vmatpush1.msra.mxu0 0.0
    %382 = vmatprep.subr.mxu0 0.0
    %383 = vmatpush1.msra.mxu0 0.0
    %384 = vmatprep.subr.mxu0 0.0
    %385 = vmatpush1.msra.mxu0 0.0
    %386 = vmatprep.subr.mxu0 0.0
    %387 = vmatpush1.msra.mxu0 0.0
    %388 = vmatprep.subr.mxu0 0.0
    %389 = vmatpush1.msra.mxu0 0.0
    %390 = vmatprep.subr.mxu0 0.0
    %391 = vmatpush1.msra.mxu0 0.0
    %392 = vmatprep.subr.mxu0 0.0
    %393 = vmatpush1.msra.mxu0 0.0
    %394 = vmatprep.subr.mxu0 0.0
    %395 = vmatpush1.msra.mxu0 0.0
    %396 = vmatprep.subr.mxu0 0.0
    %397 = vmatpush1.msra.mxu0 0.0
    %398 = vmatprep.subr.mxu0 0.0
    %399 = vmatpush1.msra.mxu0 0.0
    %400 = vmatprep.subr.mxu0 0.0
    %401 = vmatpush1.msra.mxu0 0.0
    %402 = vmatprep.subr.mxu0 0.0
    %403 = vmatpush1.msra.mxu0 0.0
    %404 = vmatprep.subr.mxu0 0.0
    %405 = vmatpush1.msra.mxu0 0.0
    %406 = vmatprep.subr.mxu0 0.0
    %407 = vmatpush1.msra.mxu0 0.0
    %408 = vmatprep.subr.mxu0 0.0
    %409 = vmatpush1.msra.mxu0 0.0
    %410 = vmatprep.subr.mxu0 0.0
    %411 = vmatpush1.msra.mxu0 0.0
    %412 = vmatprep.subr.mxu0 0.0
    %413 = vmatpush1.msra.mxu0 0.0
    %414 = vmatprep.subr.mxu0 0.0
    %415 = vmatpush1.msra.mxu0 0.0
    %416 = vmatprep.subr.mxu0 0.0
    %417 = vmatpush1.msra.mxu0 0.0
    %418 = vmatprep.subr.mxu0 0.0
    %419 = vmatpush1.msra.mxu0 0.0
    %420 = vmatprep.subr.mxu0 0.0
    %421 = vmatpush1.msra.mxu0 0.0
    %422 = vmatprep.subr.mxu0 0.0
    %423 = vmatpush1.msra.mxu0 0.0
    %424 = vmatprep.subr.mxu0 0.0
    %425 = vmatpush1.msra.mxu0 0.0
    %426 = vmatprep.mubr.f32.mxu0 0.0
    %427 = vmatmul.mubr.f32.gmra.mrb[0].mxu0 %v360
    %v428 = vpop.f32.mrb[0].mxu0
    %v429 = vadd.f32 0.0, %v428
    %v430 = vpop.f32.mrb[0].mxu0
    %431 = vdwg.mxu0
    %v433 = vsel %vm164, %v154, 0
    %v436 = vsel %vm164, %v155, 0
    %v439 = vsel %vm164, %v156, 0
    %v442 = vsel %vm164, %v157, 0
    %444 = vmatprep.subr.mxu0 0.0
    %445 = vmatpush1.xpose.msra.mxu0 %v433
    %446 = vmatprep.subr.mxu0 0.0
    %447 = vmatpush1.xpose.msra.mxu0 %v436
    %448 = vmatprep.subr.mxu0 0.0
    %449 = vmatpush1.xpose.msra.mxu0 %v439
    %450 = vmatprep.subr.mxu0 0.0
    %451 = vmatpush1.xpose.msra.mxu0 %v442
    %452 = vmatprep.subr.mxu0 0.0
    %453 = vmatpush1.xpose.msra.mxu0 0.0
    %454 = vmatprep.subr.mxu0 0.0
    %455 = vmatpush1.xpose.msra.mxu0 0.0
    %456 = vmatprep.subr.mxu0 0.0
    %457 = vmatpush1.xpose.msra.mxu0 0.0
    %458 = vmatprep.subr.mxu0 0.0
    %459 = vmatpush1.xpose.msra.mxu0 0.0
    %460 = vmatprep.subr.mxu0 0.0
    %461 = vmatpush1.xpose.msra.mxu0 0.0
    %462 = vmatprep.subr.mxu0 0.0
    %463 = vmatpush1.xpose.msra.mxu0 0.0
    %464 = vmatprep.subr.mxu0 0.0
    %465 = vmatpush1.xpose.msra.mxu0 0.0
    %466 = vmatprep.subr.mxu0 0.0
    %467 = vmatpush1.xpose.msra.mxu0 0.0
    %468 = vmatprep.subr.mxu0 0.0
    %469 = vmatpush1.xpose.msra.mxu0 0.0
    %470 = vmatprep.subr.mxu0 0.0
    %471 = vmatpush1.xpose.msra.mxu0 0.0
    %472 = vmatprep.subr.mxu0 0.0
    %473 = vmatpush1.xpose.msra.mxu0 0.0
    %474 = vmatprep.subr.mxu0 0.0
    %475 = vmatpush1.xpose.msra.mxu0 0.0
    %476 = vmatprep.subr.mxu0 0.0
    %477 = vmatpush1.xpose.msra.mxu0 0.0
    %478 = vmatprep.subr.mxu0 0.0
    %479 = vmatpush1.xpose.msra.mxu0 0.0
    %480 = vmatprep.subr.mxu0 0.0
    %481 = vmatpush1.xpose.msra.mxu0 0.0
    %482 = vmatprep.subr.mxu0 0.0
    %483 = vmatpush1.xpose.msra.mxu0 0.0
    %484 = vmatprep.subr.mxu0 0.0
    %485 = vmatpush1.xpose.msra.mxu0 0.0
    %486 = vmatprep.subr.mxu0 0.0
    %487 = vmatpush1.xpose.msra.mxu0 0.0
    %488 = vmatprep.subr.mxu0 0.0
    %489 = vmatpush1.xpose.msra.mxu0 0.0
    %490 = vmatprep.subr.mxu0 0.0
    %491 = vmatpush1.xpose.msra.mxu0 0.0
    %492 = vmatprep.subr.mxu0 0.0
    %493 = vmatpush1.xpose.msra.mxu0 0.0
    %494 = vmatprep.subr.mxu0 0.0
    %495 = vmatpush1.xpose.msra.mxu0 0.0
    %496 = vmatprep.subr.mxu0 0.0
    %497 = vmatpush1.xpose.msra.mxu0 0.0
    %498 = vmatprep.subr.mxu0 0.0
    %499 = vmatpush1.xpose.msra.mxu0 0.0
    %500 = vmatprep.subr.mxu0 0.0
    %501 = vmatpush1.xpose.msra.mxu0 0.0
    %502 = vmatprep.subr.mxu0 0.0
    %503 = vmatpush1.xpose.msra.mxu0 0.0
    %504 = vmatprep.subr.mxu0 0.0
    %505 = vmatpush1.xpose.msra.mxu0 0.0
    %506 = vmatprep.subr.mxu0 0.0
    %507 = vmatpush1.xpose.msra.mxu0 0.0
    %508 = vmatprep.mubr.f32.mxu0 0.0
    %509 = vmatmul.mubr.f32.gmra.mrb[0].mxu0 %v166
    %v510 = vpop.f32.mrb[0].mxu0
    %v511 = vadd.f32 %v429, %v510
    %v512 = vpop.f32.mrb[0].mxu0
    %513 = vdwg.mxu0
    %v514 = vmax.f32 %v511, 0.0
    %v515 = vadd.f32 %v147, %v514
    %v516 = vrot.slane %v348, 4
    %v517 = vmax.f32 %v348, %v516
    %v518 = vrot.slane %v517, 2
    %v519 = vmax.f32 %v517, %v518
    %v520 = vrot.slane %v519, 1
    %v521 = vmax.f32 %v519, %v520
    %v522 = vsub.f32 %v348, %v521
    %v523 = vmul.f32 %v522, 1.442695
    %v524 = vpow.pop %v523
    %v525 = vmul.f32 %v352, %v524
    %v526 = vsel %vm345, %v525, 0.0
    %527 = vadd.xlane.f32.xlu0 %v526
    %v528 = vpop.xlane.xlu0 %527
    %v529 = vrot.slane %v528, 4
    %v530 = vadd.f32 %v528, %v529
    %v531 = vrot.slane %v530, 2
    %v532 = vadd.f32 %v530, %v531
    %v533 = vrot.slane %v532, 1
    %v534 = vadd.f32 %v532, %v533
    %v535 = vmax.f32 %v534, 1e-30
    %v536 = vrcp.pop %v535
    %v537 = vmul.f32 %v525, %v536
    %538 = vst.msk [vmem:[#allocation4] sm:$0xff] %vm345, %v537
    %v539 = vld [vmem:[%s7] sm:$0xff]
    %v540 = vld [vmem:[%s7 + $0x8] sm:$0xff]
    %v541 = vld [vmem:[%s7 + $0x10] sm:$0xff]
    %v542 = vld [vmem:[%s7 + $0x18] sm:$0xff]
    %v543 = vld [vmem:[%s8] sm:$0xff]
    %v544 = vld [vmem:[%s8 + $0x8] sm:$0xff]
    %v545 = vld [vmem:[%s8 + $0x10] sm:$0xff]
    %v546 = vld [vmem:[%s8 + $0x18] sm:$0xff]
    %v547 = vld [vmem:[%s9] sm:$0x1]
    %v548 = vld [vmem:[%s10] sm:$0x1]
    %v550 = vsel %vm164, %v515, 0
    %v553 = vsel %vm164, %v543, 0
    %v556 = vsel %vm164, %v544, 0
    %v559 = vsel %vm164, %v545, 0
    %v562 = vsel %vm164, %v546, 0
    %564 = vmatprep.subr.mxu0 0.0
    %565 = vmatpush1.xpose.msra.mxu0 %v553
    %566 = vmatprep.subr.mxu0 0.0
    %567 = vmatpush1.xpose.msra.mxu0 %v556
    %568 = vmatprep.subr.mxu0 0.0
    %569 = vmatpush1.xpose.msra.mxu0 %v559
    %570 = vmatprep.subr.mxu0 0.0
    %571 = vmatpush1.xpose.msra.mxu0 %v562
    %572 = vmatprep.subr.mxu0 0.0
    %573 = vmatpush1.xpose.msra.mxu0 0.0
    %574 = vmatprep.subr.mxu0 0.0
    %575 = vmatpush1.xpose.msra.mxu0 0.0
    %576 = vmatprep.subr.mxu0 0.0
    %577 = vmatpush1.xpose.msra.mxu0 0.0
    %578 = vmatprep.subr.mxu0 0.0
    %579 = vmatpush1.xpose.msra.mxu0 0.0
    %580 = vmatprep.subr.mxu0 0.0
    %581 = vmatpush1.xpose.msra.mxu0 0.0
    %582 = vmatprep.subr.mxu0 0.0
    %583 = vmatpush1.xpose.msra.mxu0 0.0
    %584 = vmatprep.subr.mxu0 0.0
    %585 = vmatpush1.xpose.msra.mxu0 0.0
    %586 = vmatprep.subr.mxu0 0.0
    %587 = vmatpush1.xpose.msra.mxu0 0.0
    %588 = vmatprep.subr.mxu0 0.0
    %589 = vmatpush1.xpose.msra.mxu0 0.0
    %590 = vmatprep.subr.mxu0 0.0
    %591 = vmatpush1.xpose.msra.mxu0 0.0
    %592 = vmatprep.subr.mxu0 0.0
    %593 = vmatpush1.xpose.msra.mxu0 0.0
    %594 = vmatprep.subr.mxu0 0.0
    %595 = vmatpush1.xpose.msra.mxu0 0.0
    %596 = vmatprep.subr.mxu0 0.0
    %597 = vmatpush1.xpose.msra.mxu0 0.0
    %598 = vmatprep.subr.mxu0 0.0
    %599 = vmatpush1.xpose.msra.mxu0 0.0
    %600 = vmatprep.subr.mxu0 0.0
    %601 = vmatpush1.xpose.msra.mxu0 0.0
    %602 = vmatprep.subr.mxu0 0.0
    %603 = vmatpush1.xpose.msra.mxu0 0.0
    %604 = vmatprep.subr.mxu0 0.0
    %605 = vmatpush1.xpose.msra.mxu0 0.0
    %606 = vmatprep.subr.mxu0 0.0
    %607 = vmatpush1.xpose.msra.mxu0 0.0
    %608 = vmatprep.subr.mxu0 0.0
    %609 = vmatpush1.xpose.msra.mxu0 0.0
    %610 = vmatprep.subr.mxu0 0.0
    %611 = vmatpush1.xpose.msra.mxu0 0.0
    %612 = vmatprep.subr.mxu0 0.0
    %613 = vmatpush1.xpose.msra.mxu0 0.0
    %614 = vmatprep.subr.mxu0 0.0
    %615 = vmatpush1.xpose.msra.mxu0 0.0
    %616 = vmatprep.subr.mxu0 0.0
    %617 = vmatpush1.xpose.msra.mxu0 0.0
    %618 = vmatprep.subr.mxu0 0.0
    %619 = vmatpush1.xpose.msra.mxu0 0.0
    %620 = vmatprep.subr.mxu0 0.0
    %621 = vmatpush1.xpose.msra.mxu0 0.0
    %622 = vmatprep.subr.mxu0 0.0
    %623 = vmatpush1.xpose.msra.mxu0 0.0
    %624 = vmatprep.subr.mxu0 0.0
    %625 = vmatpush1.xpose.msra.mxu0 0.0
    %626 = vmatprep.subr.mxu0 0.0
    %627 = vmatpush1.xpose.msra.mxu0 0.0
    %628 = vmatprep.mubr.f32.mxu0 0.0
    %629 = vmatmul.mubr.f32.gmra.mrb[0].mxu0 %v550
    %v630 = vpop.f32.mrb[0].mxu0
    %v631 = vadd.f32 0.0, %v630
    %v632 = vpop.f32.mrb[0].mxu0
    %633 = vdwg.mxu0
    %v635 = vlaneseq
    %v636 = vshrl.u32 %v635, 7
    %v637 = vsub.s32 0, %v636
    %v638 = vrot.slane %v548, %v637
    %v640 = vmul.f32 %v631, %v638
    %v641 = vsel %vm164, %v640, 0.0
    %642 = vadd.xlane.f32.xlu0 %v641
    %v643 = vpop.xlane.xlu0 %642
    %v645 = vsel %vm164, %v547, 0
    %v648 = vsel %vm164, %v631, 0
    %650 = vmatprep.subr.mxu0 0.0
    %651 = vmatpush1.xpose.msra.mxu0 %v648
    %652 = vmatprep.subr.mxu0 0.0
    %653 = vmatpush1.xpose.msra.mxu0 0.0
    %654 = vmatprep.subr.mxu0 0.0
    %655 = vmatpush1.xpose.msra.mxu0 0.0
    %656 = vmatprep.subr.mxu0 0.0
    %657 = vmatpush1.xpose.msra.mxu0 0.0
    %658 = vmatprep.subr.mxu0 0.0
    %659 = vmatpush1.xpose.msra.mxu0 0.0
    %660 = vmatprep.subr.mxu0 0.0
    %661 = vmatpush1.xpose.msra.mxu0 0.0
    %662 = vmatprep.subr.mxu0 0.0
    %663 = vmatpush1.xpose.msra.mxu0 0.0
    %664 = vmatprep.subr.mxu0 0.0
    %665 = vmatpush1.xpose.msra.mxu0 0.0
    %666 = vmatprep.subr.mxu0 0.0
    %667 = vmatpush1.xpose.msra.mxu0 0.0
    %668 = vmatprep.subr.mxu0 0.0
    %669 = vmatpush1.xpose.msra.mxu0 0.0
    %670 = vmatprep.subr.mxu0 0.0
    %671 = vmatpush1.xpose.msra.mxu0 0.0
    %672 = vmatprep.subr.mxu0 0.0
    %673 = vmatpush1.xpose.msra.mxu0 0.0
    %674 = vmatprep.subr.mxu0 0.0
    %675 = vmatpush1.xpose.msra.mxu0 0.0
    %676 = vmatprep.subr.mxu0 0.0
    %677 = vmatpush1.xpose.msra.mxu0 0.0
    %678 = vmatprep.subr.mxu0 0.0
    %679 = vmatpush1.xpose.msra.mxu0 0.0
    %680 = vmatprep.subr.mxu0 0.0
    %681 = vmatpush1.xpose.msra.mxu0 0.0
    %682 = vmatprep.subr.mxu0 0.0
    %683 = vmatpush1.xpose.msra.mxu0 0.0
    %684 = vmatprep.subr.mxu0 0.0
    %685 = vmatpush1.xpose.msra.mxu0 0.0
    %686 = vmatprep.subr.mxu0 0.0
    %687 = vmatpush1.xpose.msra.mxu0 0.0
    %688 = vmatprep.subr.mxu0 0.0
    %689 = vmatpush1.xpose.msra.mxu0 0.0
    %690 = vmatprep.subr.mxu0 0.0
    %691 = vmatpush1.xpose.msra.mxu0 0.0
    %692 = vmatprep.subr.mxu0 0.0
    %693 = vmatpush1.xpose.msra.mxu0 0.0
    %694 = vmatprep.subr.mxu0 0.0
    %695 = vmatpush1.xpose.msra.mxu0 0.0
    %696 = vmatprep.subr.mxu0 0.0
    %697 = vmatpush1.xpose.msra.mxu0 0.0
    %698 = vmatprep.subr.mxu0 0.0
    %699 = vmatpush1.xpose.msra.mxu0 0.0
    %700 = vmatprep.subr.mxu0 0.0
    %701 = vmatpush1.xpose.msra.mxu0 0.0
    %702 = vmatprep.subr.mxu0 0.0
    %703 = vmatpush1.xpose.msra.mxu0 0.0
    %704 = vmatprep.subr.mxu0 0.0
    %705 = vmatpush1.xpose.msra.mxu0 0.0
    %706 = vmatprep.subr.mxu0 0.0
    %707 = vmatpush1.xpose.msra.mxu0 0.0
    %708 = vmatprep.subr.mxu0 0.0
    %709 = vmatpush1.xpose.msra.mxu0 0.0
    %710 = vmatprep.subr.mxu0 0.0
    %711 = vmatpush1.xpose.msra.mxu0 0.0
    %712 = vmatprep.subr.mxu0 0.0
    %713 = vmatpush1.xpose.msra.mxu0 0.0
    %714 = vmatprep.mubr.f32.mxu0 0.0
    %715 = vmatmul.mubr.f32.gmra.mrb[0].mxu0 %v645
    %v716 = vpop.f32.mrb[0].mxu0
    %v717 = vadd.f32 0.0, %v716
    %v718 = vpop.f32.mrb[0].mxu0
    %719 = vdwg.mxu0
    %v720 = vlaneseq
    %v721 = vshrl.u32 %v720, 7
    %v722 = vsub.s32 0, %v721
    %v723 = vrot.slane %v717, %v722
    %v724 = vadd.f32 %v643, %v723
    %vm725 = vcmp.gt.f32.partialorder %v724, 0.0
    %v726 = vmul.f32 %v724, 0.01
    %v727 = vsel %vm725, %v724, %v726
    %v728 = vsel %vm151, %v727, -1e+30
    %v729 = vsel %vm345, %v728, -inf
    %730 = vmax.xlane.f32.xlu0 %v729
    %v731 = vpop.xlane.xlu0 %730
    %v732 = vsub.f32 %v728, %v731
    %v733 = vmul.f32 %v732, 1.442695
    %v734 = vpow.pop %v733
    %v735 = vmul.f32 %v734, %v153
    %v736 = vsel %vm345, %v735, 0.0
    %737 = vadd.xlane.f32.xlu0 %v736
    %v738 = vpop.xlane.xlu0 %737
    %v739 = vmax.f32 %v738, 1e-30
    %v740 = vrcp.pop %v739
    %v741 = vmul.f32 %v735, %v740
    %v743 = vsel %vm345, %v741, 0
    %745 = vmatprep.subr.mxu0 0.0
    %746 = vmatpush1.msra.mxu0 %v631
    %747 = vmatprep.subr.mxu0 0.0
    %748 = vmatpush1.msra.mxu0 0.0
    %749 = vmatprep.subr.mxu0 0.0
    %750 = vmatpush1.msra.mxu0 0.0
    %751 = vmatprep.subr.mxu0 0.0
    %752 = vmatpush1.msra.mxu0 0.0
    %753 = vmatprep.subr.mxu0 0.0
    %754 = vmatpush1.msra.mxu0 0.0
    %755 = vmatprep.subr.mxu0 0.0
    %756 = vmatpush1.msra.mxu0 0.0
    %757 = vmatprep.subr.mxu0 0.0
    %758 = vmatpush1.msra.mxu0 0.0
    %759 = vmatprep.subr.mxu0 0.0
    %760 = vmatpush1.msra.mxu0 0.0
    %761 = vmatprep.subr.mxu0 0.0
    %762 = vmatpush1.msra.mxu0 0.0
    %763 = vmatprep.subr.mxu0 0.0
    %764 = vmatpush1.msra.mxu0 0.0
    %765 = vmatprep.subr.mxu0 0.0
    %766 = vmatpush1.msra.mxu0 0.0
    %767 = vmatprep.subr.mxu0 0.0
    %768 = vmatpush1.msra.mxu0 0.0
    %769 = vmatprep.subr.mxu0 0.0
    %770 = vmatpush1.msra.mxu0 0.0
    %771 = vmatprep.subr.mxu0 0.0
    %772 = vmatpush1.msra.mxu0 0.0
    %773 = vmatprep.subr.mxu0 0.0
    %774 = vmatpush1.msra.mxu0 0.0
    %775 = vmatprep.subr.mxu0 0.0
    %776 = vmatpush1.msra.mxu0 0.0
    %777 = vmatprep.subr.mxu0 0.0
    %778 = vmatpush1.msra.mxu0 0.0
    %779 = vmatprep.subr.mxu0 0.0
    %780 = vmatpush1.msra.mxu0 0.0
    %781 = vmatprep.subr.mxu0 0.0
    %782 = vmatpush1.msra.mxu0 0.0
    %783 = vmatprep.subr.mxu0 0.0
    %784 = vmatpush1.msra.mxu0 0.0
    %785 = vmatprep.subr.mxu0 0.0
    %786 = vmatpush1.msra.mxu0 0.0
    %787 = vmatprep.subr.mxu0 0.0
    %788 = vmatpush1.msra.mxu0 0.0
    %789 = vmatprep.subr.mxu0 0.0
    %790 = vmatpush1.msra.mxu0 0.0
    %791 = vmatprep.subr.mxu0 0.0
    %792 = vmatpush1.msra.mxu0 0.0
    %793 = vmatprep.subr.mxu0 0.0
    %794 = vmatpush1.msra.mxu0 0.0
    %795 = vmatprep.subr.mxu0 0.0
    %796 = vmatpush1.msra.mxu0 0.0
    %797 = vmatprep.subr.mxu0 0.0
    %798 = vmatpush1.msra.mxu0 0.0
    %799 = vmatprep.subr.mxu0 0.0
    %800 = vmatpush1.msra.mxu0 0.0
    %801 = vmatprep.subr.mxu0 0.0
    %802 = vmatpush1.msra.mxu0 0.0
    %803 = vmatprep.subr.mxu0 0.0
    %804 = vmatpush1.msra.mxu0 0.0
    %805 = vmatprep.subr.mxu0 0.0
    %806 = vmatpush1.msra.mxu0 0.0
    %807 = vmatprep.subr.mxu0 0.0
    %808 = vmatpush1.msra.mxu0 0.0
    %809 = vmatprep.mubr.f32.mxu0 0.0
    %810 = vmatmul.mubr.f32.gmra.mrb[0].mxu0 %v743
    %v811 = vpop.f32.mrb[0].mxu0
    %v812 = vadd.f32 0.0, %v811
    %v813 = vpop.f32.mrb[0].mxu0
    %814 = vdwg.mxu0
    %v816 = vsel %vm164, %v539, 0
    %v819 = vsel %vm164, %v540, 0
    %v822 = vsel %vm164, %v541, 0
    %v825 = vsel %vm164, %v542, 0
    %827 = vmatprep.subr.mxu0 0.0
    %828 = vmatpush1.xpose.msra.mxu0 %v816
    %829 = vmatprep.subr.mxu0 0.0
    %830 = vmatpush1.xpose.msra.mxu0 %v819
    %831 = vmatprep.subr.mxu0 0.0
    %832 = vmatpush1.xpose.msra.mxu0 %v822
    %833 = vmatprep.subr.mxu0 0.0
    %834 = vmatpush1.xpose.msra.mxu0 %v825
    %835 = vmatprep.subr.mxu0 0.0
    %836 = vmatpush1.xpose.msra.mxu0 0.0
    %837 = vmatprep.subr.mxu0 0.0
    %838 = vmatpush1.xpose.msra.mxu0 0.0
    %839 = vmatprep.subr.mxu0 0.0
    %840 = vmatpush1.xpose.msra.mxu0 0.0
    %841 = vmatprep.subr.mxu0 0.0
    %842 = vmatpush1.xpose.msra.mxu0 0.0
    %843 = vmatprep.subr.mxu0 0.0
    %844 = vmatpush1.xpose.msra.mxu0 0.0
    %845 = vmatprep.subr.mxu0 0.0
    %846 = vmatpush1.xpose.msra.mxu0 0.0
    %847 = vmatprep.subr.mxu0 0.0
    %848 = vmatpush1.xpose.msra.mxu0 0.0
    %849 = vmatprep.subr.mxu0 0.0
    %850 = vmatpush1.xpose.msra.mxu0 0.0
    %851 = vmatprep.subr.mxu0 0.0
    %852 = vmatpush1.xpose.msra.mxu0 0.0
    %853 = vmatprep.subr.mxu0 0.0
    %854 = vmatpush1.xpose.msra.mxu0 0.0
    %855 = vmatprep.subr.mxu0 0.0
    %856 = vmatpush1.xpose.msra.mxu0 0.0
    %857 = vmatprep.subr.mxu0 0.0
    %858 = vmatpush1.xpose.msra.mxu0 0.0
    %859 = vmatprep.subr.mxu0 0.0
    %860 = vmatpush1.xpose.msra.mxu0 0.0
    %861 = vmatprep.subr.mxu0 0.0
    %862 = vmatpush1.xpose.msra.mxu0 0.0
    %863 = vmatprep.subr.mxu0 0.0
    %864 = vmatpush1.xpose.msra.mxu0 0.0
    %865 = vmatprep.subr.mxu0 0.0
    %866 = vmatpush1.xpose.msra.mxu0 0.0
    %867 = vmatprep.subr.mxu0 0.0
    %868 = vmatpush1.xpose.msra.mxu0 0.0
    %869 = vmatprep.subr.mxu0 0.0
    %870 = vmatpush1.xpose.msra.mxu0 0.0
    %871 = vmatprep.subr.mxu0 0.0
    %872 = vmatpush1.xpose.msra.mxu0 0.0
    %873 = vmatprep.subr.mxu0 0.0
    %874 = vmatpush1.xpose.msra.mxu0 0.0
    %875 = vmatprep.subr.mxu0 0.0
    %876 = vmatpush1.xpose.msra.mxu0 0.0
    %877 = vmatprep.subr.mxu0 0.0
    %878 = vmatpush1.xpose.msra.mxu0 0.0
    %879 = vmatprep.subr.mxu0 0.0
    %880 = vmatpush1.xpose.msra.mxu0 0.0
    %881 = vmatprep.subr.mxu0 0.0
    %882 = vmatpush1.xpose.msra.mxu0 0.0
    %883 = vmatprep.subr.mxu0 0.0
    %884 = vmatpush1.xpose.msra.mxu0 0.0
    %885 = vmatprep.subr.mxu0 0.0
    %886 = vmatpush1.xpose.msra.mxu0 0.0
    %887 = vmatprep.subr.mxu0 0.0
    %888 = vmatpush1.xpose.msra.mxu0 0.0
    %889 = vmatprep.subr.mxu0 0.0
    %890 = vmatpush1.xpose.msra.mxu0 0.0
    %891 = vmatprep.mubr.f32.mxu0 0.0
    %892 = vmatmul.mubr.f32.gmra.mrb[0].mxu0 %v550
    %v893 = vpop.f32.mrb[0].mxu0
    %v894 = vadd.f32 %v812, %v893
    %v895 = vpop.f32.mrb[0].mxu0
    %896 = vdwg.mxu0
    %v897 = vmax.f32 %v894, 0.0
    %v898 = vadd.f32 %v515, %v897
    %v899 = vrot.slane %v731, 4
    %v900 = vmax.f32 %v731, %v899
    %v901 = vrot.slane %v900, 2
    %v902 = vmax.f32 %v900, %v901
    %v903 = vrot.slane %v902, 1
    %v904 = vmax.f32 %v902, %v903
    %v905 = vsub.f32 %v731, %v904
    %v906 = vmul.f32 %v905, 1.442695
    %v907 = vpow.pop %v906
    %v908 = vmul.f32 %v735, %v907
    %v909 = vsel %vm345, %v908, 0.0
    %910 = vadd.xlane.f32.xlu0 %v909
    %v911 = vpop.xlane.xlu0 %910
    %v912 = vrot.slane %v911, 4
    %v913 = vadd.f32 %v911, %v912
    %v914 = vrot.slane %v913, 2
    %v915 = vadd.f32 %v913, %v914
    %v916 = vrot.slane %v915, 1
    %v917 = vadd.f32 %v915, %v916
    %v918 = vmax.f32 %v917, 1e-30
    %v919 = vrcp.pop %v918
    %v920 = vmul.f32 %v908, %v919
    %921 = vst.msk [vmem:[#allocation6] sm:$0xff] %vm345, %v920
    %v922 = vld [vmem:[%s11] sm:$0xff]
    %v923 = vld [vmem:[%s11 + $0x8] sm:$0xff]
    %v924 = vld [vmem:[%s11 + $0x10] sm:$0xff]
    %v925 = vld [vmem:[%s11 + $0x18] sm:$0xff]
    %v926 = vld [vmem:[%s11 + $0x20] sm:$0xff]
    %v927 = vld [vmem:[%s11 + $0x28] sm:$0xff]
    %v928 = vld [vmem:[%s11 + $0x30] sm:$0xff]
    %v929 = vld [vmem:[%s11 + $0x38] sm:$0xff]
    %v930 = vld [vmem:[%s11 + $0x40] sm:$0xff]
    %v931 = vld [vmem:[%s11 + $0x48] sm:$0xff]
    %v932 = vld [vmem:[%s11 + $0x50] sm:$0xff]
    %v933 = vld [vmem:[%s11 + $0x58] sm:$0xff]
    %v934 = vld [vmem:[%s11 + $0x60] sm:$0xff]
    %v935 = vld [vmem:[%s11 + $0x68] sm:$0xff]
    %v936 = vld [vmem:[%s11 + $0x70] sm:$0xff]
    %v937 = vld [vmem:[%s11 + $0x78] sm:$0xff]
    %v938 = vld [vmem:[%s12] sm:$0x1]
    %v940 = vlaneseq
    %v941 = vshrl.u32 %v940, 7
    %v942 = vsub.s32 0, %v941
    %v943 = vrot.slane %v938, %v942
    %v946 = vsel %vm164, %v898, 0
    %v949 = vsel %vm164, %v922, 0
    %v952 = vsel %vm164, %v923, 0
    %v955 = vsel %vm164, %v924, 0
    %v958 = vsel %vm164, %v925, 0
    %v961 = vsel %vm164, %v926, 0
    %v964 = vsel %vm164, %v927, 0
    %v967 = vsel %vm164, %v928, 0
    %v970 = vsel %vm164, %v929, 0
    %v973 = vsel %vm164, %v930, 0
    %v976 = vsel %vm164, %v931, 0
    %v979 = vsel %vm164, %v932, 0
    %v982 = vsel %vm164, %v933, 0
    %v985 = vsel %vm164, %v934, 0
    %v988 = vsel %vm164, %v935, 0
    %v991 = vsel %vm164, %v936, 0
    %v994 = vsel %vm164, %v937, 0
    %996 = vmatprep.subr.mxu0 0.0
    %997 = vmatpush1.xpose.msra.mxu0 %v949
    %998 = vmatprep.subr.mxu0 0.0
    %999 = vmatpush1.xpose.msra.mxu0 %v952
    %1000 = vmatprep.subr.mxu0 0.0
    %1001 = vmatpush1.xpose.msra.mxu0 %v955
    %1002 = vmatprep.subr.mxu0 0.0
    %1003 = vmatpush1.xpose.msra.mxu0 %v958
    %1004 = vmatprep.subr.mxu0 0.0
    %1005 = vmatpush1.xpose.msra.mxu0 %v961
    %1006 = vmatprep.subr.mxu0 0.0
    %1007 = vmatpush1.xpose.msra.mxu0 %v964
    %1008 = vmatprep.subr.mxu0 0.0
    %1009 = vmatpush1.xpose.msra.mxu0 %v967
    %1010 = vmatprep.subr.mxu0 0.0
    %1011 = vmatpush1.xpose.msra.mxu0 %v970
    %1012 = vmatprep.subr.mxu0 0.0
    %1013 = vmatpush1.xpose.msra.mxu0 %v973
    %1014 = vmatprep.subr.mxu0 0.0
    %1015 = vmatpush1.xpose.msra.mxu0 %v976
    %1016 = vmatprep.subr.mxu0 0.0
    %1017 = vmatpush1.xpose.msra.mxu0 %v979
    %1018 = vmatprep.subr.mxu0 0.0
    %1019 = vmatpush1.xpose.msra.mxu0 %v982
    %1020 = vmatprep.subr.mxu0 0.0
    %1021 = vmatpush1.xpose.msra.mxu0 %v985
    %1022 = vmatprep.subr.mxu0 0.0
    %1023 = vmatpush1.xpose.msra.mxu0 %v988
    %1024 = vmatprep.subr.mxu0 0.0
    %1025 = vmatpush1.xpose.msra.mxu0 %v991
    %1026 = vmatprep.subr.mxu0 0.0
    %1027 = vmatpush1.xpose.msra.mxu0 %v994
    %1028 = vmatprep.subr.mxu0 0.0
    %1029 = vmatpush1.xpose.msra.mxu0 0.0
    %1030 = vmatprep.subr.mxu0 0.0
    %1031 = vmatpush1.xpose.msra.mxu0 0.0
    %1032 = vmatprep.subr.mxu0 0.0
    %1033 = vmatpush1.xpose.msra.mxu0 0.0
    %1034 = vmatprep.subr.mxu0 0.0
    %1035 = vmatpush1.xpose.msra.mxu0 0.0
    %1036 = vmatprep.subr.mxu0 0.0
    %1037 = vmatpush1.xpose.msra.mxu0 0.0
    %1038 = vmatprep.subr.mxu0 0.0
    %1039 = vmatpush1.xpose.msra.mxu0 0.0
    %1040 = vmatprep.subr.mxu0 0.0
    %1041 = vmatpush1.xpose.msra.mxu0 0.0
    %1042 = vmatprep.subr.mxu0 0.0
    %1043 = vmatpush1.xpose.msra.mxu0 0.0
    %1044 = vmatprep.subr.mxu0 0.0
    %1045 = vmatpush1.xpose.msra.mxu0 0.0
    %1046 = vmatprep.subr.mxu0 0.0
    %1047 = vmatpush1.xpose.msra.mxu0 0.0
    %1048 = vmatprep.subr.mxu0 0.0
    %1049 = vmatpush1.xpose.msra.mxu0 0.0
    %1050 = vmatprep.subr.mxu0 0.0
    %1051 = vmatpush1.xpose.msra.mxu0 0.0
    %1052 = vmatprep.subr.mxu0 0.0
    %1053 = vmatpush1.xpose.msra.mxu0 0.0
    %1054 = vmatprep.subr.mxu0 0.0
    %1055 = vmatpush1.xpose.msra.mxu0 0.0
    %1056 = vmatprep.subr.mxu0 0.0
    %1057 = vmatpush1.xpose.msra.mxu0 0.0
    %1058 = vmatprep.subr.mxu0 0.0
    %1059 = vmatpush1.xpose.msra.mxu0 0.0
    %1060 = vmatprep.mubr.f32.mxu0 0.0
    %1061 = vmatmul.mubr.f32.gmra.mrb[0].mxu0 %v946
    %v1062 = vpop.f32.mrb[0].mxu0
    %v1063 = vadd.f32 %v943, %v1062
    %v1064 = vpop.f32.mrb[0].mxu0
    %1065 = vdwg.mxu0
    %1066 = vst [vmem:[#allocation2] sm:$0xff] %v1063
    // Predicated region
    $region58: #{tpu_custom_call.1} parent=1 // pred_check
      _
    $region59: #{tpu_custom_call.1} parent=1 // pred_check_branch
      %1068 = sbr.rel (0) target = $region61
    $region60: #{tpu_custom_call.1} parent=1 // pred_region
      %s1070 = ssub.s32 128, 128
      %1071 = vsyncadd [#allocation3], %s1070
      %s1073 = sshll.u32 [#allocation2], 4
      %s1074 = int_to_ptr.vmem [resolvable:$true] %s1073
      %1076 = dma.vmem_to_hbm [thread:$0]  %s1074, 128, %s14, [#allocation3]
    $region61: #{tpu_custom_call.1} parent=1 // pred_fallthru
      _
    // Predicated region
    $region62: #{tpu_custom_call.1} parent=1 // pred_check
      _
    $region63: #{tpu_custom_call.1} parent=1 // pred_check_branch
      %1078 = sbr.rel (0) target = $region65
    $region64: #{tpu_custom_call.1} parent=1 // pred_region
      %s1080 = ssub.s32 128, 128
      %1081 = vsyncadd [#allocation5], %s1080
      %s1083 = sshll.u32 [#allocation4], 4
      %s1084 = int_to_ptr.vmem [resolvable:$true] %s1083
      %1086 = dma.vmem_to_hbm [thread:$0]  %s1084, 128, %s15, [#allocation5]
    $region65: #{tpu_custom_call.1} parent=1 // pred_fallthru
      _
    // Predicated region
    $region66: #{tpu_custom_call.1} parent=1 // pred_check
      _
    $region67: #{tpu_custom_call.1} parent=1 // pred_check_branch
      %1088 = sbr.rel (0) target = $region69
    $region68: #{tpu_custom_call.1} parent=1 // pred_region
      %s1090 = ssub.s32 128, 128
      %1091 = vsyncadd [#allocation5], %s1090
      %s1093 = sshll.u32 [#allocation6], 4
      %s1094 = int_to_ptr.vmem [resolvable:$true] %s1093
      %1096 = dma.vmem_to_hbm [thread:$0]  %s1094, 128, %s16, [#allocation5]
    $region69: #{tpu_custom_call.1} parent=1 // pred_fallthru
      _
    // Predicated region
    $region70: #{tpu_custom_call.1} parent=1 // pred_check
      _
    $region71: #{tpu_custom_call.1} parent=1 // pred_check_branch
      %1098 = sbr.rel (0) target = $region73
    $region72: #{tpu_custom_call.1} parent=1 // pred_region
      %1099 = dma.done [#allocation3], 128
    $region73: #{tpu_custom_call.1} parent=1 // pred_fallthru
      _
    // Predicated region
    $region74: #{tpu_custom_call.1} parent=1 // pred_check
      _
    $region75: #{tpu_custom_call.1} parent=1 // pred_check_branch
      %1101 = sbr.rel (0) target = $region77
    $region76: #{tpu_custom_call.1} parent=1 // pred_region
      %1102 = dma.done [#allocation5], 128
    $region77: #{tpu_custom_call.1} parent=1 // pred_fallthru
      _
    // Predicated region
    $region78: #{tpu_custom_call.1} parent=1 // pred_check
      _
    $region79: #{tpu_custom_call.1} parent=1 // pred_check_branch
      %1104 = sbr.rel (0) target = $region81
    $region80: #{tpu_custom_call.1} parent=1 // pred_region
      %1105 = dma.done [#allocation5], 128
    $region81: #{tpu_custom_call.1} parent=1 // pred_fallthru
      _
    %1106 = vsyncpa [#allocation3], 1
    %1107 = vsyncpa [#allocation5], 1

</llo_original>
